<compile_context>
chip_gen: v7x
topology: tpu7x:2x2x1
jax: 0.10.0
libtpu: 0.0.40
codegen_flags: <defaults>
</compile_context>

<pallas_src>
import functools

import jax
import jax.numpy as jnp
from jax import lax
from jax.experimental import pallas as pl
from jax.experimental.pallas import tpu as pltpu


def _layer_norm(t, gamma, beta, eps=1e-6):
    mu = jnp.mean(t, axis=-1, keepdims=True)
    var = jnp.mean(jnp.square(t - mu), axis=-1, keepdims=True)
    return (t - mu) * lax.rsqrt(var + eps) * gamma + beta


def cross_encoder_kernel(x1_ref, x2_ref, mask_ref,
                         wq_ref, wkv_ref, wo_ref,
                         ln1_g_ref, ln1_b_ref,
                         w1_ref, b1_ref, w2_ref, b2_ref,
                         ln2_g_ref, ln2_b_ref,
                         out_ref, attn_ref,
                         kv_ref,
                         *, n_head, d_k, d_v, n_ffn_chunks):
    qi = pl.program_id(1)
    cdt = kv_ref.dtype                       # matmul-operand (compute) dtype, bf16
    hdk = n_head * d_k

    # --- fused K/V projection for the full key sequence: once per batch element ---
    @pl.when(qi == 0)
    def _():
        kv = jnp.dot(x2_ref[0], wkv_ref[...], preferred_element_type=jnp.float32)
        kv_ref[...] = kv.astype(cdt)

    x1 = x1_ref[0]                           # (TQ, D) bf16 query tile
    residual = x1.astype(jnp.float32)

    # Q projection; fold 1/sqrt(d_k) into q instead of dividing each (TQ, Lk) score tile.
    q = jnp.dot(x1, wq_ref[...], preferred_element_type=jnp.float32)
    q = (q * (1.0 / (d_k ** 0.5))).astype(cdt)          # (TQ, H*d_k)

    kv = kv_ref[...]                          # (Lk, H*d_k + H*d_v) bf16
    k_all = kv[:, :hdk]
    v_all = kv[:, hdk:]
    wo = wo_ref[...]                          # (H*d_v, D) bf16
    keep = mask_ref[0] != 0                   # (TQ, Lk)

    # Per-head attention; fc projection fused into the accumulation (no concat).
    o_acc = residual
    for h in range(n_head):
        qh = q[:, h * d_k:(h + 1) * d_k]                      # (TQ, d_k)
        kh = k_all[:, h * d_k:(h + 1) * d_k]                  # (Lk, d_k)
        vh = v_all[:, h * d_v:(h + 1) * d_v]                  # (Lk, d_v)
        # q @ k^T without materializing the transpose (contract last dims).
        s = lax.dot_general(qh, kh, (((1,), (1,)), ((), ())),
                            preferred_element_type=jnp.float32)   # (TQ, Lk)
        s = jnp.where(keep, s, -1e9)
        s = s - jnp.max(s, axis=-1, keepdims=True)
        p = jnp.exp(s)
        probs = p * pl.reciprocal(jnp.sum(p, axis=-1, keepdims=True), approx=True)
        attn_ref[0, h] = probs.astype(attn_ref.dtype)
        ctx = jnp.dot(probs.astype(cdt), vh, preferred_element_type=jnp.float32)
        o_acc = o_acc + jnp.dot(ctx.astype(cdt), wo[h * d_v:(h + 1) * d_v, :],
                                preferred_element_type=jnp.float32)

    y = _layer_norm(o_acc, ln1_g_ref[...], ln1_b_ref[...])        # post-LN, eps=1e-6

    # --- Position-wise FFN, chunked over d_inner so the (TQ, d_inner) activation is never live ---
    y_c = y.astype(cdt)
    z0 = y + b2_ref[...]                                          # residual + w2 bias

    def ffn_chunk(c, z):
        hc = jnp.dot(y_c, w1_ref[c], preferred_element_type=jnp.float32) + b1_ref[c]
        hc = jnp.maximum(hc, 0.0)
        return z + jnp.dot(hc.astype(cdt), w2_ref[c], preferred_element_type=jnp.float32)

    z = lax.fori_loop(0, n_ffn_chunks, ffn_chunk, z0, unroll=True)
    out = _layer_norm(z, ln2_g_ref[...], ln2_b_ref[...])          # post-LN, eps=1e-6

    out_ref[0] = out.astype(out_ref.dtype)


def cross_transformer_block(x1, x2, mask, params, *, n_head, d_k, d_v,
                            q_tile=None, ffn_chunk=512,
                            compute_dtype=jnp.bfloat16):
    """Returns (output (B,Lq,D), attention probs (B,H,Lq,Lk)) like the PyTorch module."""
    B, Lq, D = x1.shape
    Lk = x2.shape[1]
    d_inner = params["w1"].shape[1]
    hdk, hdv = n_head * d_k, n_head * d_v
    cdt = compute_dtype

    # Query tiling (lane-dense (TQ, D) output tiles; gives the grid steps to pipeline).
    if q_tile is None:
        q_tile = Lq
        for t in (512, 256, 128):
            if Lq % t == 0:
                q_tile = t
                break
    assert Lq % q_tile == 0
    nq = Lq // q_tile

    # FFN d_inner chunking.
    chunk = ffn_chunk if d_inner % ffn_chunk == 0 else d_inner
    n_chunks = d_inner // chunk

    # Host-side weight packing / casting (free at trace time).
    wq = params["wq"].astype(cdt)
    wkv = jnp.concatenate([params["wk"], params["wv"]], axis=1).astype(cdt)   # fused K/V proj
    wo = params["wo"].astype(cdt)
    w1 = params["w1"].reshape(D, n_chunks, chunk).transpose(1, 0, 2).astype(cdt)
    b1 = params["b1"].reshape(n_chunks, 1, chunk).astype(jnp.float32)
    w2 = params["w2"].reshape(n_chunks, chunk, D).astype(cdt)
    b2 = params["b2"].astype(jnp.float32)
    ln1_g = params["ln1_g"].astype(jnp.float32)
    ln1_b = params["ln1_b"].astype(jnp.float32)
    ln2_g = params["ln2_g"].astype(jnp.float32)
    ln2_b = params["ln2_b"].astype(jnp.float32)
    x1c = x1.astype(cdt)
    x2c = x2.astype(cdt)
    mask_i = jnp.broadcast_to(mask, (B, Lq, Lk)).astype(jnp.int32)

    def const(shape):
        return pl.BlockSpec(shape, lambda b, qi: (0,) * len(shape))

    kern = functools.partial(cross_encoder_kernel, n_head=n_head, d_k=d_k, d_v=d_v,
                             n_ffn_chunks=n_chunks)

    # NOTE(v7x): weight BlockSpecs are constant-index; if double-buffering of constants
    # becomes the VMEM limiter, single-buffer them (pipeline_mode) or shrink ffn_chunk.
    out, attn = pl.pallas_call(
        kern,
        out_shape=(jax.ShapeDtypeStruct((B, Lq, D), x1.dtype),
                   jax.ShapeDtypeStruct((B, n_head, Lq, Lk), jnp.float32)),
        grid=(B, nq),
        in_specs=[
            pl.BlockSpec((1, q_tile, D), lambda b, qi: (b, qi, 0)),   # cro_input1 (queries)
            pl.BlockSpec((1, Lk, D), lambda b, qi: (b, 0, 0)),        # cro_input2 (keys/values)
            pl.BlockSpec((1, q_tile, Lk), lambda b, qi: (b, qi, 0)),  # mask
            const((D, hdk)),                    # w_qs
            const((D, hdk + hdv)),              # w_ks ‖ w_vs (fused)
            const((hdv, D)),                    # fc
            const((1, D)), const((1, D)),       # layer_norm 1 gamma / beta
            const((n_chunks, D, chunk)),        # ffn w_1 (chunked over d_inner)
            const((n_chunks, 1, chunk)),        # ffn b_1 (chunked)
            const((n_chunks, chunk, D)),        # ffn w_2 (chunked)
            const((1, D)),                      # ffn b_2
            const((1, D)), const((1, D)),       # layer_norm 2 gamma / beta
        ],
        out_specs=(
            pl.BlockSpec((1, q_tile, D), lambda b, qi: (b, qi, 0)),
            pl.BlockSpec((1, n_head, q_tile, Lk), lambda b, qi: (b, 0, qi, 0)),
        ),
        scratch_shapes=[pltpu.VMEM((Lk, hdk + hdv), cdt)],            # K/V, reused across q-tiles
        compiler_params=pltpu.CompilerParams(
            dimension_semantics=("parallel", "arbitrary"),
            vmem_limit_bytes=48 * 1024 * 1024,
        ),
    )(x1c, x2c, mask_i, wq, wkv, wo,
      ln1_g, ln1_b, w1, b1, w2, b2, ln2_g, ln2_b)
    return out, attn


def reference_cross_block(x1, x2, mask, p, *, n_head, d_k, d_v):
    """Pure-JAX (f32) reference mirroring the PyTorch forward (eval mode)."""
    B, Lq, D = x1.shape
    Lk = x2.shape[1]
    q = x1 @ p["wq"]
    k = x2 @ p["wk"]
    v = x2 @ p["wv"]
    qh = q.reshape(B, Lq, n_head, d_k).transpose(0, 2, 1, 3)
    kh = k.reshape(B, Lk, n_head, d_k).transpose(0, 2, 1, 3)
    vh = v.reshape(B, Lk, n_head, d_v).transpose(0, 2, 1, 3)
    s = jnp.einsum("bhqd,bhkd->bhqk", qh, kh) / (d_k ** 0.5)
    s = jnp.where(mask[:, None, :, :] != 0, s, -1e9)
    attn = jax.nn.softmax(s, axis=-1)
    ctx = jnp.einsum("bhqk,bhkd->bhqd", attn, vh).transpose(0, 2, 1, 3).reshape(B, Lq, n_head * d_v)
    o = ctx @ p["wo"] + x1

    def ln(t, g, b):
        mu = t.mean(-1, keepdims=True)
        var = ((t - mu) ** 2).mean(-1, keepdims=True)
        return (t - mu) / jnp.sqrt(var + 1e-6) * g + b

    y = ln(o, p["ln1_g"], p["ln1_b"])
    h = jax.nn.relu(y @ p["w1"] + p["b1"])
    z = h @ p["w2"] + p["b2"] + y
    return ln(z, p["ln2_g"], p["ln2_b"]), attn


if __name__ == "__main__":
    # Small shapes consistent with the module's __init__ signature.
    B, Lq, Lk = 2, 8, 8
    d_model, d_inner, n_head, d_k, d_v = 32, 64, 4, 8, 8
    # dropout=0.1 in the module, identity at inference.

    key = jax.random.PRNGKey(0)
    ks = jax.random.split(key, 12)
    params = {
        "wq": 0.05 * jax.random.normal(ks[0], (d_model, n_head * d_k), jnp.float32),
        "wk": 0.05 * jax.random.normal(ks[1], (d_model, n_head * d_k), jnp.float32),
        "wv": 0.05 * jax.random.normal(ks[2], (d_model, n_head * d_v), jnp.float32),
        "wo": 0.05 * jax.random.normal(ks[3], (n_head * d_v, d_model), jnp.float32),
        "ln1_g": jnp.ones((1, d_model), jnp.float32),
        "ln1_b": jnp.zeros((1, d_model), jnp.float32),
        "w1": 0.05 * jax.random.normal(ks[4], (d_model, d_inner), jnp.float32),
        "b1": 0.01 * jax.random.normal(ks[5], (1, d_inner), jnp.float32),
        "w2": 0.05 * jax.random.normal(ks[6], (d_inner, d_model), jnp.float32),
        "b2": 0.01 * jax.random.normal(ks[7], (1, d_model), jnp.float32),
        "ln2_g": jnp.ones((1, d_model), jnp.float32),
        "ln2_b": jnp.zeros((1, d_model), jnp.float32),
    }
    x1 = jax.random.normal(ks[8], (B, Lq, d_model), jnp.float32)    # cro_input1 (queries)
    x2 = jax.random.normal(ks[9], (B, Lk, d_model), jnp.float32)    # cro_input2 (keys/values)
    # Padding mask on keys: batch 0 sees all keys, batch 1 masks the last 2.
    lens = jnp.array([Lk, Lk - 2], jnp.int32)
    mask = (jnp.arange(Lk)[None, None, :] < lens[:, None, None]).astype(jnp.int32)
    mask = jnp.broadcast_to(mask, (B, Lq, Lk))

    out, attn = cross_transformer_block(x1, x2, mask, params,
                                        n_head=n_head, d_k=d_k, d_v=d_v)
    out = jax.block_until_ready(out)
    attn = jax.block_until_ready(attn)

    ref_out, ref_attn = reference_cross_block(x1, x2, mask, params,
                                              n_head=n_head, d_k=d_k, d_v=d_v)
    assert out.shape == (B, Lq, d_model)
    assert attn.shape == (B, n_head, Lq, Lk)
    err_o = float(jnp.max(jnp.abs(out - ref_out)))
    err_a = float(jnp.max(jnp.abs(attn - ref_attn)))
    # bf16 matmul operands + approx reciprocal => looser tolerance vs the f32 reference.
    assert err_o < 3e-2 and err_a < 3e-2, (err_o, err_a)

    print("KERNEL_OK")
</pallas_src>

<mosaic_0001>
module attributes {stable_mosaic.version = 11 : i64} {
  func.func @cross_encoder_kernel(%arg0: i32, %arg1: i32, %arg2: memref<1x8x32xbf16, #tpu.memory_space<vmem>>, %arg3: memref<1x8x32xbf16, #tpu.memory_space<vmem>>, %arg4: memref<1x8x8xi32, #tpu.memory_space<vmem>>, %arg5: memref<32x32xbf16, #tpu.memory_space<vmem>>, %arg6: memref<32x64xbf16, #tpu.memory_space<vmem>>, %arg7: memref<32x32xbf16, #tpu.memory_space<vmem>>, %arg8: memref<1x32xf32, #tpu.memory_space<vmem>>, %arg9: memref<1x32xf32, #tpu.memory_space<vmem>>, %arg10: memref<1x32x64xbf16, #tpu.memory_space<vmem>>, %arg11: memref<1x1x64xf32, #tpu.memory_space<vmem>>, %arg12: memref<1x64x32xbf16, #tpu.memory_space<vmem>>, %arg13: memref<1x32xf32, #tpu.memory_space<vmem>>, %arg14: memref<1x32xf32, #tpu.memory_space<vmem>>, %arg15: memref<1x32xf32, #tpu.memory_space<vmem>>, %arg16: memref<1x8x32xf32, #tpu.memory_space<vmem>>, %arg17: memref<1x4x8x8xf32, #tpu.memory_space<vmem>>, %arg18: memref<8x64xbf16, #tpu.memory_space<vmem>>) attributes {dimension_semantics = [#tpu.dimension_semantics<parallel>, #tpu.dimension_semantics<arbitrary>], iteration_bounds = array<i64: 2, 1>, scalar_prefetch = 0 : i64, scratch_operands = 1 : i64, tpu.core_type = #tpu.core_type<tc>, window_params = [{transform_indices = @transform_0, window_bounds = array<i64: 1, 8, 32>}, {transform_indices = @transform_1, window_bounds = array<i64: 1, 8, 32>}, {transform_indices = @transform_2, window_bounds = array<i64: 1, 8, 8>}, {pipeline_mode = #tpu.pipeline_mode<synchronous>, transform_indices = @transform_3, window_bounds = array<i64: 32, 32>}, {pipeline_mode = #tpu.pipeline_mode<synchronous>, transform_indices = @transform_4, window_bounds = array<i64: 32, 64>}, {pipeline_mode = #tpu.pipeline_mode<synchronous>, transform_indices = @transform_5, window_bounds = array<i64: 32, 32>}, {pipeline_mode = #tpu.pipeline_mode<synchronous>, transform_indices = @transform_6, window_bounds = array<i64: 1, 32>}, {pipeline_mode = #tpu.pipeline_mode<synchronous>, transform_indices = @transform_7, window_bounds = array<i64: 1, 32>}, {pipeline_mode = #tpu.pipeline_mode<synchronous>, transform_indices = @transform_8, window_bounds = array<i64: 1, 32, 64>}, {pipeline_mode = #tpu.pipeline_mode<synchronous>, transform_indices = @transform_9, window_bounds = array<i64: 1, 1, 64>}, {pipeline_mode = #tpu.pipeline_mode<synchronous>, transform_indices = @transform_10, window_bounds = array<i64: 1, 64, 32>}, {pipeline_mode = #tpu.pipeline_mode<synchronous>, transform_indices = @transform_11, window_bounds = array<i64: 1, 32>}, {pipeline_mode = #tpu.pipeline_mode<synchronous>, transform_indices = @transform_12, window_bounds = array<i64: 1, 32>}, {pipeline_mode = #tpu.pipeline_mode<synchronous>, transform_indices = @transform_13, window_bounds = array<i64: 1, 32>}, {transform_indices = @transform_14, window_bounds = array<i64: 1, 8, 32>}, {transform_indices = @transform_15, window_bounds = array<i64: 1, 4, 8, 8>}]} {
    %c0_i32 = arith.constant 0 : i32
    %0 = arith.cmpi eq, %arg1, %c0_i32 : i32
    %1 = arith.extui %0 : i1 to i32
    %c0_i32_0 = arith.constant 0 : i32
    %2 = arith.cmpi ne, %1, %c0_i32_0 : i32
    scf.if %2 {
      %c0_84 = arith.constant 0 : index
      %c0_85 = arith.constant 0 : index
      %c0_86 = arith.constant 0 : index
      %191 = vector.load %arg3[%c0_84, %c0_85, %c0_86] : memref<1x8x32xbf16, #tpu.memory_space<vmem>>, vector<1x8x32xbf16>
      %192 = vector.shape_cast %191 : vector<1x8x32xbf16> to vector<8x32xbf16>
      %c0_87 = arith.constant 0 : index
      %c0_88 = arith.constant 0 : index
      %193 = vector.load %arg6[%c0_87, %c0_88] : memref<32x64xbf16, #tpu.memory_space<vmem>>, vector<32x64xbf16>
      %cst_89 = arith.constant dense<0.000000e+00> : vector<8x64xf32>
      %194 = tpu.matmul %192, %193, %cst_89 {dimension_numbers = #tpu.dot_dimension_numbers<[1], [0], [0], [1], [0, 0, 1, 1], [], []>} : vector<8x32xbf16>, vector<32x64xbf16>, vector<8x64xf32> -> vector<8x64xf32>
      %195 = arith.truncf %194 : vector<8x64xf32> to vector<8x64xbf16>
      %c0_90 = arith.constant 0 : index
      %c0_91 = arith.constant 0 : index
      %196 = vector.load %arg18[%c0_90, %c0_91] : memref<8x64xbf16, #tpu.memory_space<vmem>>, vector<8x64xbf16>
      tpu.vector_store %arg18[%c0_90, %c0_91], %195 {strides = array<i32>} : memref<8x64xbf16, #tpu.memory_space<vmem>>, vector<8x64xbf16>,
    } else {
    }
    %c0 = arith.constant 0 : index
    %c0_1 = arith.constant 0 : index
    %c0_2 = arith.constant 0 : index
    %3 = vector.load %arg2[%c0, %c0_1, %c0_2] : memref<1x8x32xbf16, #tpu.memory_space<vmem>>, vector<1x8x32xbf16>
    %4 = vector.shape_cast %3 : vector<1x8x32xbf16> to vector<8x32xbf16>
    %5 = arith.extf %4 : vector<8x32xbf16> to vector<8x32xf32>
    %c0_3 = arith.constant 0 : index
    %c0_4 = arith.constant 0 : index
    %6 = vector.load %arg5[%c0_3, %c0_4] : memref<32x32xbf16, #tpu.memory_space<vmem>>, vector<32x32xbf16>
    %cst = arith.constant dense<0.000000e+00> : vector<8x32xf32>
    %7 = tpu.matmul %4, %6, %cst {dimension_numbers = #tpu.dot_dimension_numbers<[1], [0], [0], [1], [0, 0, 1, 1], [], []>} : vector<8x32xbf16>, vector<32x32xbf16>, vector<8x32xf32> -> vector<8x32xf32>
    %cst_5 = arith.constant 0.353553385 : f32
    %8 = vector.broadcast %cst_5 : f32 to vector<8x32xf32>
    %9 = arith.mulf %7, %8 : vector<8x32xf32>
    %10 = arith.truncf %9 : vector<8x32xf32> to vector<8x32xbf16>
    %c0_6 = arith.constant 0 : index
    %c0_7 = arith.constant 0 : index
    %11 = vector.load %arg18[%c0_6, %c0_7] : memref<8x64xbf16, #tpu.memory_space<vmem>>, vector<8x64xbf16>
    %12 = vector.extract_strided_slice %11 {offsets = [0, 0], sizes = [8, 32], strides = [1, 1]} : vector<8x64xbf16> to vector<8x32xbf16>
    %13 = vector.extract_strided_slice %11 {offsets = [0, 32], sizes = [8, 32], strides = [1, 1]} : vector<8x64xbf16> to vector<8x32xbf16>
    %c0_8 = arith.constant 0 : index
    %c0_9 = arith.constant 0 : index
    %14 = vector.load %arg7[%c0_8, %c0_9] : memref<32x32xbf16, #tpu.memory_space<vmem>>, vector<32x32xbf16>
    %c0_10 = arith.constant 0 : index
    %c0_11 = arith.constant 0 : index
    %c0_12 = arith.constant 0 : index
    %15 = vector.load %arg4[%c0_10, %c0_11, %c0_12] : memref<1x8x8xi32, #tpu.memory_space<vmem>>, vector<1x8x8xi32>
    %16 = vector.shape_cast %15 : vector<1x8x8xi32> to vector<8x8xi32>
    %c0_i32_13 = arith.constant 0 : i32
    %17 = vector.broadcast %c0_i32_13 : i32 to vector<8x8xi32>
    %18 = arith.cmpi ne, %16, %17 : vector<8x8xi32>
    %19 = vector.extract_strided_slice %10 {offsets = [0, 0], sizes = [8, 8], strides = [1, 1]} : vector<8x32xbf16> to vector<8x8xbf16>
    %20 = vector.extract_strided_slice %12 {offsets = [0, 0], sizes = [8, 8], strides = [1, 1]} : vector<8x32xbf16> to vector<8x8xbf16>
    %21 = vector.extract_strided_slice %13 {offsets = [0, 0], sizes = [8, 8], strides = [1, 1]} : vector<8x32xbf16> to vector<8x8xbf16>
    %cst_14 = arith.constant dense<0.000000e+00> : vector<8x8xf32>
    %22 = tpu.matmul %19, %20, %cst_14 {dimension_numbers = #tpu.dot_dimension_numbers<[1], [1], [0], [0], [0, 0, 1, 0], [], []>} : vector<8x8xbf16>, vector<8x8xbf16>, vector<8x8xf32> -> vector<8x8xf32>
    %cst_15 = arith.constant -1.000000e+09 : f32
    %23 = vector.broadcast %cst_15 : f32 to vector<8x8xf32>
    %24 = arith.select %18, %22, %23 : vector<8x8xi1>, vector<8x8xf32>
    %cst_16 = arith.constant dense<0xFF800000> : vector<8xf32>
    %25 = vector.multi_reduction <maximumf>, %24, %cst_16 [1] : vector<8x8xf32> to vector<8xf32>
    %26 = vector.shape_cast %25 : vector<8xf32> to vector<8x1xf32>
    %27 = vector.broadcast %26 : vector<8x1xf32> to vector<8x8xf32>
    %28 = arith.subf %24, %27 : vector<8x8xf32>
    %29 = math.exp %28 : vector<8x8xf32>
    %cst_17 = arith.constant dense<0.000000e+00> : vector<8xf32>
    %30 = vector.multi_reduction <add>, %29, %cst_17 [1] : vector<8x8xf32> to vector<8xf32>
    %31 = vector.shape_cast %30 : vector<8xf32> to vector<8x1xf32>
    %32 = tpu.reciprocal %31 {approx = true} : vector<8x1xf32> -> vector<8x1xf32>
    %33 = vector.broadcast %32 : vector<8x1xf32> to vector<8x8xf32>
    %34 = arith.mulf %29, %33 : vector<8x8xf32>
    %c0_18 = arith.constant 0 : index
    %c0_19 = arith.constant 0 : index
    %c0_20 = arith.constant 0 : index
    %c0_21 = arith.constant 0 : index
    %35 = vector.load %arg17[%c0_18, %c0_19, %c0_20, %c0_21] : memref<1x4x8x8xf32, #tpu.memory_space<vmem>>, vector<1x1x8x8xf32>
    %36 = vector.shape_cast %35 : vector<1x1x8x8xf32> to vector<8x8xf32>
    %37 = vector.shape_cast %34 : vector<8x8xf32> to vector<1x1x8x8xf32>
    tpu.vector_store %arg17[%c0_18, %c0_19, %c0_20, %c0_21], %37 {strides = array<i32>} : memref<1x4x8x8xf32, #tpu.memory_space<vmem>>, vector<1x1x8x8xf32>,
    %38 = arith.truncf %34 : vector<8x8xf32> to vector<8x8xbf16>
    %cst_22 = arith.constant dense<0.000000e+00> : vector<8x8xf32>
    %39 = tpu.matmul %38, %21, %cst_22 {dimension_numbers = #tpu.dot_dimension_numbers<[1], [0], [0], [1], [0, 0, 1, 1], [], []>} : vector<8x8xbf16>, vector<8x8xbf16>, vector<8x8xf32> -> vector<8x8xf32>
    %40 = arith.truncf %39 : vector<8x8xf32> to vector<8x8xbf16>
    %41 = vector.extract_strided_slice %14 {offsets = [0, 0], sizes = [8, 32], strides = [1, 1]} : vector<32x32xbf16> to vector<8x32xbf16>
    %cst_23 = arith.constant dense<0.000000e+00> : vector<8x32xf32>
    %42 = tpu.matmul %40, %41, %cst_23 {dimension_numbers = #tpu.dot_dimension_numbers<[1], [0], [0], [1], [0, 0, 1, 1], [], []>} : vector<8x8xbf16>, vector<8x32xbf16>, vector<8x32xf32> -> vector<8x32xf32>
    %43 = arith.addf %5, %42 : vector<8x32xf32>
    %44 = vector.extract_strided_slice %10 {offsets = [0, 8], sizes = [8, 8], strides = [1, 1]} : vector<8x32xbf16> to vector<8x8xbf16>
    %45 = vector.extract_strided_slice %12 {offsets = [0, 8], sizes = [8, 8], strides = [1, 1]} : vector<8x32xbf16> to vector<8x8xbf16>
    %46 = vector.extract_strided_slice %13 {offsets = [0, 8], sizes = [8, 8], strides = [1, 1]} : vector<8x32xbf16> to vector<8x8xbf16>
    %cst_24 = arith.constant dense<0.000000e+00> : vector<8x8xf32>
    %47 = tpu.matmul %44, %45, %cst_24 {dimension_numbers = #tpu.dot_dimension_numbers<[1], [1], [0], [0], [0, 0, 1, 0], [], []>} : vector<8x8xbf16>, vector<8x8xbf16>, vector<8x8xf32> -> vector<8x8xf32>
    %cst_25 = arith.constant -1.000000e+09 : f32
    %48 = vector.broadcast %cst_25 : f32 to vector<8x8xf32>
    %49 = arith.select %18, %47, %48 : vector<8x8xi1>, vector<8x8xf32>
    %cst_26 = arith.constant dense<0xFF800000> : vector<8xf32>
    %50 = vector.multi_reduction <maximumf>, %49, %cst_26 [1] : vector<8x8xf32> to vector<8xf32>
    %51 = vector.shape_cast %50 : vector<8xf32> to vector<8x1xf32>
    %52 = vector.broadcast %51 : vector<8x1xf32> to vector<8x8xf32>
    %53 = arith.subf %49, %52 : vector<8x8xf32>
    %54 = math.exp %53 : vector<8x8xf32>
    %cst_27 = arith.constant dense<0.000000e+00> : vector<8xf32>
    %55 = vector.multi_reduction <add>, %54, %cst_27 [1] : vector<8x8xf32> to vector<8xf32>
    %56 = vector.shape_cast %55 : vector<8xf32> to vector<8x1xf32>
    %57 = tpu.reciprocal %56 {approx = true} : vector<8x1xf32> -> vector<8x1xf32>
    %58 = vector.broadcast %57 : vector<8x1xf32> to vector<8x8xf32>
    %59 = arith.mulf %54, %58 : vector<8x8xf32>
    %c0_28 = arith.constant 0 : index
    %c1 = arith.constant 1 : index
    %c0_29 = arith.constant 0 : index
    %c0_30 = arith.constant 0 : index
    %60 = vector.load %arg17[%c0_28, %c1, %c0_29, %c0_30] : memref<1x4x8x8xf32, #tpu.memory_space<vmem>>, vector<1x1x8x8xf32>
    %61 = vector.shape_cast %60 : vector<1x1x8x8xf32> to vector<8x8xf32>
    %62 = vector.shape_cast %59 : vector<8x8xf32> to vector<1x1x8x8xf32>
    tpu.vector_store %arg17[%c0_28, %c1, %c0_29, %c0_30], %62 {strides = array<i32>} : memref<1x4x8x8xf32, #tpu.memory_space<vmem>>, vector<1x1x8x8xf32>,
    %63 = arith.truncf %59 : vector<8x8xf32> to vector<8x8xbf16>
    %cst_31 = arith.constant dense<0.000000e+00> : vector<8x8xf32>
    %64 = tpu.matmul %63, %46, %cst_31 {dimension_numbers = #tpu.dot_dimension_numbers<[1], [0], [0], [1], [0, 0, 1, 1], [], []>} : vector<8x8xbf16>, vector<8x8xbf16>, vector<8x8xf32> -> vector<8x8xf32>
    %65 = arith.truncf %64 : vector<8x8xf32> to vector<8x8xbf16>
    %66 = vector.extract_strided_slice %14 {offsets = [8, 0], sizes = [8, 32], strides = [1, 1]} : vector<32x32xbf16> to vector<8x32xbf16>
    %cst_32 = arith.constant dense<0.000000e+00> : vector<8x32xf32>
    %67 = tpu.matmul %65, %66, %cst_32 {dimension_numbers = #tpu.dot_dimension_numbers<[1], [0], [0], [1], [0, 0, 1, 1], [], []>} : vector<8x8xbf16>, vector<8x32xbf16>, vector<8x32xf32> -> vector<8x32xf32>
    %68 = arith.addf %43, %67 : vector<8x32xf32>
    %69 = vector.extract_strided_slice %10 {offsets = [0, 16], sizes = [8, 8], strides = [1, 1]} : vector<8x32xbf16> to vector<8x8xbf16>
    %70 = vector.extract_strided_slice %12 {offsets = [0, 16], sizes = [8, 8], strides = [1, 1]} : vector<8x32xbf16> to vector<8x8xbf16>
    %71 = vector.extract_strided_slice %13 {offsets = [0, 16], sizes = [8, 8], strides = [1, 1]} : vector<8x32xbf16> to vector<8x8xbf16>
    %cst_33 = arith.constant dense<0.000000e+00> : vector<8x8xf32>
    %72 = tpu.matmul %69, %70, %cst_33 {dimension_numbers = #tpu.dot_dimension_numbers<[1], [1], [0], [0], [0, 0, 1, 0], [], []>} : vector<8x8xbf16>, vector<8x8xbf16>, vector<8x8xf32> -> vector<8x8xf32>
    %cst_34 = arith.constant -1.000000e+09 : f32
    %73 = vector.broadcast %cst_34 : f32 to vector<8x8xf32>
    %74 = arith.select %18, %72, %73 : vector<8x8xi1>, vector<8x8xf32>
    %cst_35 = arith.constant dense<0xFF800000> : vector<8xf32>
    %75 = vector.multi_reduction <maximumf>, %74, %cst_35 [1] : vector<8x8xf32> to vector<8xf32>
    %76 = vector.shape_cast %75 : vector<8xf32> to vector<8x1xf32>
    %77 = vector.broadcast %76 : vector<8x1xf32> to vector<8x8xf32>
    %78 = arith.subf %74, %77 : vector<8x8xf32>
    %79 = math.exp %78 : vector<8x8xf32>
    %cst_36 = arith.constant dense<0.000000e+00> : vector<8xf32>
    %80 = vector.multi_reduction <add>, %79, %cst_36 [1] : vector<8x8xf32> to vector<8xf32>
    %81 = vector.shape_cast %80 : vector<8xf32> to vector<8x1xf32>
    %82 = tpu.reciprocal %81 {approx = true} : vector<8x1xf32> -> vector<8x1xf32>
    %83 = vector.broadcast %82 : vector<8x1xf32> to vector<8x8xf32>
    %84 = arith.mulf %79, %83 : vector<8x8xf32>
    %c0_37 = arith.constant 0 : index
    %c2 = arith.constant 2 : index
    %c0_38 = arith.constant 0 : index
    %c0_39 = arith.constant 0 : index
    %85 = vector.load %arg17[%c0_37, %c2, %c0_38, %c0_39] : memref<1x4x8x8xf32, #tpu.memory_space<vmem>>, vector<1x1x8x8xf32>
    %86 = vector.shape_cast %85 : vector<1x1x8x8xf32> to vector<8x8xf32>
    %87 = vector.shape_cast %84 : vector<8x8xf32> to vector<1x1x8x8xf32>
    tpu.vector_store %arg17[%c0_37, %c2, %c0_38, %c0_39], %87 {strides = array<i32>} : memref<1x4x8x8xf32, #tpu.memory_space<vmem>>, vector<1x1x8x8xf32>,
    %88 = arith.truncf %84 : vector<8x8xf32> to vector<8x8xbf16>
    %cst_40 = arith.constant dense<0.000000e+00> : vector<8x8xf32>
    %89 = tpu.matmul %88, %71, %cst_40 {dimension_numbers = #tpu.dot_dimension_numbers<[1], [0], [0], [1], [0, 0, 1, 1], [], []>} : vector<8x8xbf16>, vector<8x8xbf16>, vector<8x8xf32> -> vector<8x8xf32>
    %90 = arith.truncf %89 : vector<8x8xf32> to vector<8x8xbf16>
    %91 = vector.extract_strided_slice %14 {offsets = [16, 0], sizes = [8, 32], strides = [1, 1]} : vector<32x32xbf16> to vector<8x32xbf16>
    %cst_41 = arith.constant dense<0.000000e+00> : vector<8x32xf32>
    %92 = tpu.matmul %90, %91, %cst_41 {dimension_numbers = #tpu.dot_dimension_numbers<[1], [0], [0], [1], [0, 0, 1, 1], [], []>} : vector<8x8xbf16>, vector<8x32xbf16>, vector<8x32xf32> -> vector<8x32xf32>
    %93 = arith.addf %68, %92 : vector<8x32xf32>
    %94 = vector.extract_strided_slice %10 {offsets = [0, 24], sizes = [8, 8], strides = [1, 1]} : vector<8x32xbf16> to vector<8x8xbf16>
    %95 = vector.extract_strided_slice %12 {offsets = [0, 24], sizes = [8, 8], strides = [1, 1]} : vector<8x32xbf16> to vector<8x8xbf16>
    %96 = vector.extract_strided_slice %13 {offsets = [0, 24], sizes = [8, 8], strides = [1, 1]} : vector<8x32xbf16> to vector<8x8xbf16>
    %cst_42 = arith.constant dense<0.000000e+00> : vector<8x8xf32>
    %97 = tpu.matmul %94, %95, %cst_42 {dimension_numbers = #tpu.dot_dimension_numbers<[1], [1], [0], [0], [0, 0, 1, 0], [], []>} : vector<8x8xbf16>, vector<8x8xbf16>, vector<8x8xf32> -> vector<8x8xf32>
    %cst_43 = arith.constant -1.000000e+09 : f32
    %98 = vector.broadcast %cst_43 : f32 to vector<8x8xf32>
    %99 = arith.select %18, %97, %98 : vector<8x8xi1>, vector<8x8xf32>
    %cst_44 = arith.constant dense<0xFF800000> : vector<8xf32>
    %100 = vector.multi_reduction <maximumf>, %99, %cst_44 [1] : vector<8x8xf32> to vector<8xf32>
    %101 = vector.shape_cast %100 : vector<8xf32> to vector<8x1xf32>
    %102 = vector.broadcast %101 : vector<8x1xf32> to vector<8x8xf32>
    %103 = arith.subf %99, %102 : vector<8x8xf32>
    %104 = math.exp %103 : vector<8x8xf32>
    %cst_45 = arith.constant dense<0.000000e+00> : vector<8xf32>
    %105 = vector.multi_reduction <add>, %104, %cst_45 [1] : vector<8x8xf32> to vector<8xf32>
    %106 = vector.shape_cast %105 : vector<8xf32> to vector<8x1xf32>
    %107 = tpu.reciprocal %106 {approx = true} : vector<8x1xf32> -> vector<8x1xf32>
    %108 = vector.broadcast %107 : vector<8x1xf32> to vector<8x8xf32>
    %109 = arith.mulf %104, %108 : vector<8x8xf32>
    %c0_46 = arith.constant 0 : index
    %c3 = arith.constant 3 : index
    %c0_47 = arith.constant 0 : index
    %c0_48 = arith.constant 0 : index
    %110 = vector.load %arg17[%c0_46, %c3, %c0_47, %c0_48] : memref<1x4x8x8xf32, #tpu.memory_space<vmem>>, vector<1x1x8x8xf32>
    %111 = vector.shape_cast %110 : vector<1x1x8x8xf32> to vector<8x8xf32>
    %112 = vector.shape_cast %109 : vector<8x8xf32> to vector<1x1x8x8xf32>
    tpu.vector_store %arg17[%c0_46, %c3, %c0_47, %c0_48], %112 {strides = array<i32>} : memref<1x4x8x8xf32, #tpu.memory_space<vmem>>, vector<1x1x8x8xf32>,
    %113 = arith.truncf %109 : vector<8x8xf32> to vector<8x8xbf16>
    %cst_49 = arith.constant dense<0.000000e+00> : vector<8x8xf32>
    %114 = tpu.matmul %113, %96, %cst_49 {dimension_numbers = #tpu.dot_dimension_numbers<[1], [0], [0], [1], [0, 0, 1, 1], [], []>} : vector<8x8xbf16>, vector<8x8xbf16>, vector<8x8xf32> -> vector<8x8xf32>
    %115 = arith.truncf %114 : vector<8x8xf32> to vector<8x8xbf16>
    %116 = vector.extract_strided_slice %14 {offsets = [24, 0], sizes = [8, 32], strides = [1, 1]} : vector<32x32xbf16> to vector<8x32xbf16>
    %cst_50 = arith.constant dense<0.000000e+00> : vector<8x32xf32>
    %117 = tpu.matmul %115, %116, %cst_50 {dimension_numbers = #tpu.dot_dimension_numbers<[1], [0], [0], [1], [0, 0, 1, 1], [], []>} : vector<8x8xbf16>, vector<8x32xbf16>, vector<8x32xf32> -> vector<8x32xf32>
    %118 = arith.addf %93, %117 : vector<8x32xf32>
    %c0_51 = arith.constant 0 : index
    %c0_52 = arith.constant 0 : index
    %119 = vector.load %arg8[%c0_51, %c0_52] : memref<1x32xf32, #tpu.memory_space<vmem>>, vector<1x32xf32>
    %c0_53 = arith.constant 0 : index
    %c0_54 = arith.constant 0 : index
    %120 = vector.load %arg9[%c0_53, %c0_54] : memref<1x32xf32, #tpu.memory_space<vmem>>, vector<1x32xf32>
    %cst_55 = arith.constant dense<0.000000e+00> : vector<8xf32>
    %121 = vector.multi_reduction <add>, %118, %cst_55 [1] : vector<8x32xf32> to vector<8xf32>
    %122 = vector.shape_cast %121 : vector<8xf32> to vector<8x1xf32>
    %cst_56 = arith.constant 3.200000e+01 : f32
    %123 = vector.broadcast %cst_56 : f32 to vector<8x1xf32>
    %124 = arith.divf %122, %123 : vector<8x1xf32>
    %125 = vector.broadcast %124 : vector<8x1xf32> to vector<8x32xf32>
    %126 = arith.subf %118, %125 : vector<8x32xf32>
    %127 = arith.mulf %126, %126 : vector<8x32xf32>
    %cst_57 = arith.constant dense<0.000000e+00> : vector<8xf32>
    %128 = vector.multi_reduction <add>, %127, %cst_57 [1] : vector<8x32xf32> to vector<8xf32>
    %129 = vector.shape_cast %128 : vector<8xf32> to vector<8x1xf32>
    %cst_58 = arith.constant 3.200000e+01 : f32
    %130 = vector.broadcast %cst_58 : f32 to vector<8x1xf32>
    %131 = arith.divf %129, %130 : vector<8x1xf32>
    %132 = vector.broadcast %124 : vector<8x1xf32> to vector<8x32xf32>
    %133 = arith.subf %118, %132 : vector<8x32xf32>
    %cst_59 = arith.constant 9.99999997E-7 : f32
    %134 = vector.broadcast %cst_59 : f32 to vector<8x1xf32>
    %135 = arith.addf %131, %134 : vector<8x1xf32>
    %136 = math.rsqrt %135 : vector<8x1xf32>
    %137 = vector.broadcast %136 : vector<8x1xf32> to vector<8x32xf32>
    %138 = arith.mulf %133, %137 : vector<8x32xf32>
    %139 = vector.broadcast %119 : vector<1x32xf32> to vector<8x32xf32>
    %140 = arith.mulf %138, %139 : vector<8x32xf32>
    %141 = vector.broadcast %120 : vector<1x32xf32> to vector<8x32xf32>
    %142 = arith.addf %140, %141 : vector<8x32xf32>
    %143 = arith.truncf %142 : vector<8x32xf32> to vector<8x32xbf16>
    %c0_60 = arith.constant 0 : index
    %c0_61 = arith.constant 0 : index
    %144 = vector.load %arg13[%c0_60, %c0_61] : memref<1x32xf32, #tpu.memory_space<vmem>>, vector<1x32xf32>
    %145 = vector.broadcast %144 : vector<1x32xf32> to vector<8x32xf32>
    %146 = arith.addf %142, %145 : vector<8x32xf32>
    %c0_i32_62 = arith.constant 0 : i32
    %147 = arith.index_cast %c0_i32_62 : i32 to index
    %c0_63 = arith.constant 0 : index
    %c0_64 = arith.constant 0 : index
    %148 = vector.load %arg10[%147, %c0_63, %c0_64] : memref<1x32x64xbf16, #tpu.memory_space<vmem>>, vector<1x32x64xbf16>
    %149 = vector.shape_cast %148 : vector<1x32x64xbf16> to vector<32x64xbf16>
    %cst_65 = arith.constant dense<0.000000e+00> : vector<8x64xf32>
    %150 = tpu.matmul %143, %149, %cst_65 {dimension_numbers = #tpu.dot_dimension_numbers<[1], [0], [0], [1], [0, 0, 1, 1], [], []>} : vector<8x32xbf16>, vector<32x64xbf16>, vector<8x64xf32> -> vector<8x64xf32>
    %151 = arith.index_cast %c0_i32_62 : i32 to index
    %c0_66 = arith.constant 0 : index
    %c0_67 = arith.constant 0 : index
    %152 = vector.load %arg11[%151, %c0_66, %c0_67] : memref<1x1x64xf32, #tpu.memory_space<vmem>>, vector<1x1x64xf32>
    %153 = vector.shape_cast %152 : vector<1x1x64xf32> to vector<1x64xf32>
    %154 = vector.broadcast %153 : vector<1x64xf32> to vector<8x64xf32>
    %155 = arith.addf %150, %154 : vector<8x64xf32>
    %cst_68 = arith.constant 0.000000e+00 : f32
    %156 = vector.broadcast %cst_68 : f32 to vector<8x64xf32>
    %157 = arith.maximumf %155, %156 : vector<8x64xf32>
    %158 = arith.truncf %157 : vector<8x64xf32> to vector<8x64xbf16>
    %159 = arith.index_cast %c0_i32_62 : i32 to index
    %c0_69 = arith.constant 0 : index
    %c0_70 = arith.constant 0 : index
    %160 = vector.load %arg12[%159, %c0_69, %c0_70] : memref<1x64x32xbf16, #tpu.memory_space<vmem>>, vector<1x64x32xbf16>
    %161 = vector.shape_cast %160 : vector<1x64x32xbf16> to vector<64x32xbf16>
    %cst_71 = arith.constant dense<0.000000e+00> : vector<8x32xf32>
    %162 = tpu.matmul %158, %161, %cst_71 {dimension_numbers = #tpu.dot_dimension_numbers<[1], [0], [0], [1], [0, 0, 1, 1], [], []>} : vector<8x64xbf16>, vector<64x32xbf16>, vector<8x32xf32> -> vector<8x32xf32>
    %163 = arith.addf %146, %162 : vector<8x32xf32>
    %c1_i32 = arith.constant 1 : i32
    %c0_72 = arith.constant 0 : index
    %c0_73 = arith.constant 0 : index
    %164 = vector.load %arg14[%c0_72, %c0_73] : memref<1x32xf32, #tpu.memory_space<vmem>>, vector<1x32xf32>
    %c0_74 = arith.constant 0 : index
    %c0_75 = arith.constant 0 : index
    %165 = vector.load %arg15[%c0_74, %c0_75] : memref<1x32xf32, #tpu.memory_space<vmem>>, vector<1x32xf32>
    %cst_76 = arith.constant dense<0.000000e+00> : vector<8xf32>
    %166 = vector.multi_reduction <add>, %163, %cst_76 [1] : vector<8x32xf32> to vector<8xf32>
    %167 = vector.shape_cast %166 : vector<8xf32> to vector<8x1xf32>
    %cst_77 = arith.constant 3.200000e+01 : f32
    %168 = vector.broadcast %cst_77 : f32 to vector<8x1xf32>
    %169 = arith.divf %167, %168 : vector<8x1xf32>
    %170 = vector.broadcast %169 : vector<8x1xf32> to vector<8x32xf32>
    %171 = arith.subf %163, %170 : vector<8x32xf32>
    %172 = arith.mulf %171, %171 : vector<8x32xf32>
    %cst_78 = arith.constant dense<0.000000e+00> : vector<8xf32>
    %173 = vector.multi_reduction <add>, %172, %cst_78 [1] : vector<8x32xf32> to vector<8xf32>
    %174 = vector.shape_cast %173 : vector<8xf32> to vector<8x1xf32>
    %cst_79 = arith.constant 3.200000e+01 : f32
    %175 = vector.broadcast %cst_79 : f32 to vector<8x1xf32>
    %176 = arith.divf %174, %175 : vector<8x1xf32>
    %177 = vector.broadcast %169 : vector<8x1xf32> to vector<8x32xf32>
    %178 = arith.subf %163, %177 : vector<8x32xf32>
    %cst_80 = arith.constant 9.99999997E-7 : f32
    %179 = vector.broadcast %cst_80 : f32 to vector<8x1xf32>
    %180 = arith.addf %176, %179 : vector<8x1xf32>
    %181 = math.rsqrt %180 : vector<8x1xf32>
    %182 = vector.broadcast %181 : vector<8x1xf32> to vector<8x32xf32>
    %183 = arith.mulf %178, %182 : vector<8x32xf32>
    %184 = vector.broadcast %164 : vector<1x32xf32> to vector<8x32xf32>
    %185 = arith.mulf %183, %184 : vector<8x32xf32>
    %186 = vector.broadcast %165 : vector<1x32xf32> to vector<8x32xf32>
    %187 = arith.addf %185, %186 : vector<8x32xf32>
    %c0_81 = arith.constant 0 : index
    %c0_82 = arith.constant 0 : index
    %c0_83 = arith.constant 0 : index
    %188 = vector.load %arg16[%c0_81, %c0_82, %c0_83] : memref<1x8x32xf32, #tpu.memory_space<vmem>>, vector<1x8x32xf32>
    %189 = vector.shape_cast %188 : vector<1x8x32xf32> to vector<8x32xf32>
    %190 = vector.shape_cast %187 : vector<8x32xf32> to vector<1x8x32xf32>
    tpu.vector_store %arg16[%c0_81, %c0_82, %c0_83], %190 {strides = array<i32>} : memref<1x8x32xf32, #tpu.memory_space<vmem>>, vector<1x8x32xf32>,
    return
  }
  func.func @transform_0(%arg0: i32, %arg1: i32) -> (i32, i32, i32) {
    %c0_i32 = arith.constant 0 : i32
    %c0_i32_0 = arith.constant 0 : i32
    return %arg0, %arg1, %c0_i32 : i32, i32, i32
  }
  func.func @transform_1(%arg0: i32, %arg1: i32) -> (i32, i32, i32) {
    %c0_i32 = arith.constant 0 : i32
    %c0_i32_0 = arith.constant 0 : i32
    %c0_i32_1 = arith.constant 0 : i32
    return %arg0, %c0_i32, %c0_i32_0 : i32, i32, i32
  }
  func.func @transform_2(%arg0: i32, %arg1: i32) -> (i32, i32, i32) {
    %c0_i32 = arith.constant 0 : i32
    %c0_i32_0 = arith.constant 0 : i32
    return %arg0, %arg1, %c0_i32 : i32, i32, i32
  }
  func.func @transform_3(%arg0: i32, %arg1: i32) -> (i32, i32) {
    %c0_i32 = arith.constant 0 : i32
    %c0_i32_0 = arith.constant 0 : i32
    %c0_i32_1 = arith.constant 0 : i32
    return %c0_i32, %c0_i32_0 : i32, i32
  }
  func.func @transform_4(%arg0: i32, %arg1: i32) -> (i32, i32) {
    %c0_i32 = arith.constant 0 : i32
    %c0_i32_0 = arith.constant 0 : i32
    %c0_i32_1 = arith.constant 0 : i32
    return %c0_i32, %c0_i32_0 : i32, i32
  }
  func.func @transform_5(%arg0: i32, %arg1: i32) -> (i32, i32) {
    %c0_i32 = arith.constant 0 : i32
    %c0_i32_0 = arith.constant 0 : i32
    %c0_i32_1 = arith.constant 0 : i32
    return %c0_i32, %c0_i32_0 : i32, i32
  }
  func.func @transform_6(%arg0: i32, %arg1: i32) -> (i32, i32) {
    %c0_i32 = arith.constant 0 : i32
    %c0_i32_0 = arith.constant 0 : i32
    %c0_i32_1 = arith.constant 0 : i32
    return %c0_i32, %c0_i32_0 : i32, i32
  }
  func.func @transform_7(%arg0: i32, %arg1: i32) -> (i32, i32) {
    %c0_i32 = arith.constant 0 : i32
    %c0_i32_0 = arith.constant 0 : i32
    %c0_i32_1 = arith.constant 0 : i32
    return %c0_i32, %c0_i32_0 : i32, i32
  }
  func.func @transform_8(%arg0: i32, %arg1: i32) -> (i32, i32, i32) {
    %c0_i32 = arith.constant 0 : i32
    %c0_i32_0 = arith.constant 0 : i32
    %c0_i32_1 = arith.constant 0 : i32
    %c0_i32_2 = arith.constant 0 : i32
    return %c0_i32, %c0_i32_0, %c0_i32_1 : i32, i32, i32
  }
  func.func @transform_9(%arg0: i32, %arg1: i32) -> (i32, i32, i32) {
    %c0_i32 = arith.constant 0 : i32
    %c0_i32_0 = arith.constant 0 : i32
    %c0_i32_1 = arith.constant 0 : i32
    %c0_i32_2 = arith.constant 0 : i32
    return %c0_i32, %c0_i32_0, %c0_i32_1 : i32, i32, i32
  }
  func.func @transform_10(%arg0: i32, %arg1: i32) -> (i32, i32, i32) {
    %c0_i32 = arith.constant 0 : i32
    %c0_i32_0 = arith.constant 0 : i32
    %c0_i32_1 = arith.constant 0 : i32
    %c0_i32_2 = arith.constant 0 : i32
    return %c0_i32, %c0_i32_0, %c0_i32_1 : i32, i32, i32
  }
  func.func @transform_11(%arg0: i32, %arg1: i32) -> (i32, i32) {
    %c0_i32 = arith.constant 0 : i32
    %c0_i32_0 = arith.constant 0 : i32
    %c0_i32_1 = arith.constant 0 : i32
    return %c0_i32, %c0_i32_0 : i32, i32
  }
  func.func @transform_12(%arg0: i32, %arg1: i32) -> (i32, i32) {
    %c0_i32 = arith.constant 0 : i32
    %c0_i32_0 = arith.constant 0 : i32
    %c0_i32_1 = arith.constant 0 : i32
    return %c0_i32, %c0_i32_0 : i32, i32
  }
  func.func @transform_13(%arg0: i32, %arg1: i32) -> (i32, i32) {
    %c0_i32 = arith.constant 0 : i32
    %c0_i32_0 = arith.constant 0 : i32
    %c0_i32_1 = arith.constant 0 : i32
    return %c0_i32, %c0_i32_0 : i32, i32
  }
  func.func @transform_14(%arg0: i32, %arg1: i32) -> (i32, i32, i32) {
    %c0_i32 = arith.constant 0 : i32
    %c0_i32_0 = arith.constant 0 : i32
    return %arg0, %arg1, %c0_i32 : i32, i32, i32
  }
  func.func @transform_15(%arg0: i32, %arg1: i32) -> (i32, i32, i32, i32) {
    %c0_i32 = arith.constant 0 : i32
    %c0_i32_0 = arith.constant 0 : i32
    %c0_i32_1 = arith.constant 0 : i32
    return %arg0, %c0_i32, %arg1, %c0_i32_0 : i32, i32, i32, i32
  }
}

</mosaic_0001>

<llo_original>
// kernel: tpu_custom_call.1
$region0: #{tpu_custom_call.1}
  #allocation0 [shape = 'u32[]', space=smem, size = 0x4, offset = 0x4, fixed_abs, tag = 'smem constant byte address 0x4 - core index']
  #allocation1 [shape = 'u32[144,128]{1,0:T(1,128)}', space=vmem, size = 0x12000, scoped, tag = 'internal scratch']
  #allocation2 [shape = 'bf16[8,64]{1,0:T(8,128)(2,1)}', space=vmem, size = 0x800, scoped, tag = 'scratch operand']
  %s0 = inlined_call_operand.hbm [shape: bf16[2,8,32], index: 0, kind: input, shape index: {}]
  %s1 = inlined_call_operand.hbm [shape: bf16[2,8,32], index: 1, kind: input, shape index: {}]
  %s2 = inlined_call_operand.vmem [shape: s32[2,8,8], index: 2, kind: input, shape index: {}]
  %s3 = inlined_call_operand.vmem [shape: bf16[32,32], index: 3, kind: input, shape index: {}]
  %s4 = inlined_call_operand.vmem [shape: bf16[32,64], index: 4, kind: input, shape index: {}]
  %s5 = inlined_call_operand.hbm [shape: bf16[32,32], index: 5, kind: input, shape index: {}]
  %s6 = inlined_call_operand.vmem [shape: f32[1,32], index: 6, kind: input, shape index: {}]
  %s7 = inlined_call_operand.vmem [shape: f32[1,32], index: 7, kind: input, shape index: {}]
  %s8 = inlined_call_operand.hbm [shape: bf16[1,32,64], index: 8, kind: input, shape index: {}]
  %s9 = inlined_call_operand.vmem [shape: f32[1,1,64], index: 9, kind: input, shape index: {}]
  %s10 = inlined_call_operand.vmem [shape: bf16[1,64,32], index: 10, kind: input, shape index: {}]
  %s11 = inlined_call_operand.vmem [shape: f32[1,32], index: 11, kind: input, shape index: {}]
  %s12 = inlined_call_operand.vmem [shape: f32[1,32], index: 12, kind: input, shape index: {}]
  %s13 = inlined_call_operand.vmem [shape: f32[1,32], index: 13, kind: input, shape index: {}]
  %s14 = inlined_call_operand.hbm [shape: f32[2,8,32], index: 14, kind: output, shape index: {0}]
  %s15 = inlined_call_operand.hbm [shape: f32[2,4,8,8], index: 15, kind: output, shape index: {1}]
  %16 = xla_tuple %s14, %s15
  %s17 = sld [smem:[#allocation0]]
  $region117: #{tpu_custom_call.1} parent=0
    _
  %s19 = ssub.s32 1, %s17
  %s20 = scalar_select 0, %s19, %s17
  $region1: #{tpu_custom_call.1} parent=0
    #allocation3 [shape = 'u8[4096]{0}', space=vmem, size = 0x1000, scoped, tag = 'input window, operand 0']
    #allocation4 [shape = 's32[2]{0}', space=sflag, size = 0x8, scoped, tag = 'scoped memory for tpu_custom_call.1']
    #allocation5 [shape = 's32[2]{0}', space=sflag, size = 0x8, scoped, tag = 'scoped memory for tpu_custom_call.1']
    #allocation6 [shape = 'u8[4096]{0}', space=vmem, size = 0x1000, scoped, tag = 'input window, operand 1']
    #allocation7 [shape = 's32[2]{0}', space=sflag, size = 0x8, scoped, tag = 'scoped memory for tpu_custom_call.1']
    #allocation8 [shape = 'u8[8192]{0}', space=vmem, size = 0x2000, scoped, tag = 'input window, operand 5, single buffered']
    #allocation9 [shape = 'u8[8192]{0}', space=vmem, size = 0x2000, scoped, tag = 'input window, operand 8, single buffered']
    #allocation10 [shape = 's32[1]{0}', space=sflag, size = 0x4, scoped, tag = 'scoped memory for tpu_custom_call.1']
    #allocation11 [shape = 'u8[8192]{0}', space=vmem, size = 0x2000, scoped, tag = 'output window, operand 0']
    #allocation12 [shape = 'u8[32768]{0}', space=vmem, size = 0x8000, scoped, tag = 'output window, operand 1']
    #allocation13 [shape = 's32[2]{0}', space=sflag, size = 0x8, scoped, tag = 'scoped memory for tpu_custom_call.1']
    %21 = vsyncpa [#allocation4], 0
    %s22 = scalar_lea.sflag [#allocation4], 1
    %23 = vsyncpa %s22, 0
    %24 = vsyncpa [#allocation7], 0
    %s25 = scalar_lea.sflag [#allocation7], 1
    %26 = vsyncpa %s25, 0
    %27 = vsyncpa [#allocation10], 0
    %28 = vsyncpa [#allocation5], 0
    %s29 = scalar_lea.sflag [#allocation5], 1
    %30 = vsyncpa %s29, 0
    %31 = vsyncpa [#allocation13], 0
    %s32 = scalar_lea.sflag [#allocation13], 1
    %33 = vsyncpa %s32, 0
    loop: start=0, step=1, limit=4
    $region2: #{tpu_custom_call.1} parent=1 // loop_pre_header
      _
    $region3: #{tpu_custom_call.1} parent=1 // loop_header
      %s35 = sphi 0, %s39
      %p36 = scmp.ge.s32.totalorder %s35, 4
      %s42 = sphi 0, %s54
      %s43 = sphi 0, %s50
      %s44 = sphi 0, %s42
      %s45 = sphi 0, %s43
      %s46 = sphi 0, %s44
      %s47 = sphi 0, %s45
      %s59 = sphi 0, %s61
      %s62 = sphi 0, %s59
      %s63 = sphi 0, %s62
      %s79 = sphi 0, %s63
      %s85 = sphi 0, %s87
      %s88 = sphi 0, %s85
      %s89 = sphi 0, %s88
      %s105 = sphi 0, %s89
      %s113 = sphi 0, %s115
      %s116 = sphi 0, %s113
      %s117 = sphi 0, %s116
      %s133 = sphi 0, %s117
      %s137 = sphi 0, %s137
      %s139 = sphi 0, %s137
      %s140 = sphi 0, %s139
      %s154 = sphi 0, %s140
      %s158 = sphi 0, %s158
      %s160 = sphi 0, %s158
      %s161 = sphi 0, %s160
      %s175 = sphi 0, %s161
      %s179 = sphi 0, %s179
      %s181 = sphi 0, %s179
      %s182 = sphi 0, %s181
      %s196 = sphi 0, %s182
      %s200 = sphi 0, %s200
      %s202 = sphi 0, %s200
      %s203 = sphi 0, %s202
      %s217 = sphi 0, %s203
      %s221 = sphi 0, %s221
      %s223 = sphi 0, %s221
      %s224 = sphi 0, %s223
      %s238 = sphi 0, %s224
      %s242 = sphi 0, %s242
      %s244 = sphi 0, %s242
      %s245 = sphi 0, %s244
      %s259 = sphi 0, %s245
      %s263 = sphi 0, %s263
      %s265 = sphi 0, %s263
      %s266 = sphi 0, %s265
      %s280 = sphi 0, %s266
      %s284 = sphi 0, %s284
      %s286 = sphi 0, %s284
      %s287 = sphi 0, %s286
      %s301 = sphi 0, %s287
      %s305 = sphi 0, %s305
      %s307 = sphi 0, %s305
      %s308 = sphi 0, %s307
      %s322 = sphi 0, %s308
      %s326 = sphi 0, %s326
      %s328 = sphi 0, %s326
      %s329 = sphi 0, %s328
      %s343 = sphi 0, %s329
      %s347 = sphi 0, %s347
      %s349 = sphi 0, %s347
      %s350 = sphi 0, %s349
      %s364 = sphi 0, %s350
      %s372 = sphi 0, %s374
      %s375 = sphi 0, %s372
      %s376 = sphi 0, %s375
      %s392 = sphi 0, %s376
      %s400 = sphi 0, %s402
      %s403 = sphi 0, %s400
      %s404 = sphi 0, %s403
      %s420 = sphi 0, %s404
    $region4: #{tpu_custom_call.1} parent=1 // loop_header_branch
      %38 = sbr.rel (%p36) target = $region8
    $region5: #{tpu_custom_call.1} parent=1 // loop_body
      %s40 = ssub.s32 %s35, 1
      %s41 = ssub.s32 %s35, 2
      %s48 = sadd.s32 1, %s43
      %p49 = scmp.ge.s32.totalorder %s48, 1
      %s50 = scalar_select %p49, 0, %s48
      %s51 = sadd.s32 1, %s42
      %s52 = scalar_select %p49, %s51, %s42
      %p53 = scmp.ge.s32.totalorder %s52, 2
      %s54 = scalar_select %p53, 0, %s52
      %s55 = ssub.s32 %s42, %s54
      %s56 = ssub.s32 %s43, %s50
      %s57 = sor.u32 %s55, %s56
      %p58 = scmp.eq.s32.totalorder %s57, 0
      %s60 = sadd.s32 %s59, 1
      %s61 = scalar_select %p58, %s59, %s60
      %p64 = pneg %p58
      %p65 = scmp.eq.s32.totalorder %s35, 1
      %p66 = por %p64, %p65
      %p67 = scmp.ne.s32.totalorder %s59, %s62
      %p68 = scmp.eq.s32.totalorder %s35, 0
      %p69 = por %p67, %p68
      %p70 = scmp.ne.s32.totalorder %s59, %s62
      %p71 = scmp.eq.s32.totalorder %s40, 1
      %p72 = por %p70, %p71
      %p73 = scmp.ne.s32.totalorder %s62, %s63
      %p74 = scmp.eq.s32.totalorder %s40, 0
      %p75 = por %p73, %p74
      %p76 = scmp.ne.s32.totalorder %s62, %s63
      %p77 = scmp.eq.s32.totalorder %s41, 1
      %p78 = por %p76, %p77
      %p80 = scmp.ne.s32.totalorder %s63, %s79
      %p81 = scmp.eq.s32.totalorder %s41, 0
      %p82 = por %p80, %p81
      %s83 = ssub.s32 %s42, %s54
      %p84 = scmp.eq.s32.totalorder %s83, 0
      %s86 = sadd.s32 %s85, 1
      %s87 = scalar_select %p84, %s85, %s86
      %p90 = pneg %p84
      %p91 = scmp.eq.s32.totalorder %s35, 1
      %p92 = por %p90, %p91
      %p93 = scmp.ne.s32.totalorder %s85, %s88
      %p94 = scmp.eq.s32.totalorder %s35, 0
      %p95 = por %p93, %p94
      %p96 = scmp.ne.s32.totalorder %s85, %s88
      %p97 = scmp.eq.s32.totalorder %s40, 1
      %p98 = por %p96, %p97
      %p99 = scmp.ne.s32.totalorder %s88, %s89
      %p100 = scmp.eq.s32.totalorder %s40, 0
      %p101 = por %p99, %p100
      %p102 = scmp.ne.s32.totalorder %s88, %s89
      %p103 = scmp.eq.s32.totalorder %s41, 1
      %p104 = por %p102, %p103
      %p106 = scmp.ne.s32.totalorder %s89, %s105
      %p107 = scmp.eq.s32.totalorder %s41, 0
      %p108 = por %p106, %p107
      %s109 = ssub.s32 %s42, %s54
      %s110 = ssub.s32 %s43, %s50
      %s111 = sor.u32 %s109, %s110
      %p112 = scmp.eq.s32.totalorder %s111, 0
      %s114 = sadd.s32 %s113, 1
      %s115 = scalar_select %p112, %s113, %s114
      %p118 = pneg %p112
      %p119 = scmp.eq.s32.totalorder %s35, 1
      %p120 = por %p118, %p119
      %p121 = scmp.ne.s32.totalorder %s113, %s116
      %p122 = scmp.eq.s32.totalorder %s35, 0
      %p123 = por %p121, %p122
      %p124 = scmp.ne.s32.totalorder %s113, %s116
      %p125 = scmp.eq.s32.totalorder %s40, 1
      %p126 = por %p124, %p125
      %p127 = scmp.ne.s32.totalorder %s116, %s117
      %p128 = scmp.eq.s32.totalorder %s40, 0
      %p129 = por %p127, %p128
      %p130 = scmp.ne.s32.totalorder %s116, %s117
      %p131 = scmp.eq.s32.totalorder %s41, 1
      %p132 = por %p130, %p131
      %p134 = scmp.ne.s32.totalorder %s117, %s133
      %p135 = scmp.eq.s32.totalorder %s41, 0
      %p136 = por %p134, %p135
      %s138 = sadd.s32 %s137, 1
      %p141 = scmp.eq.s32.totalorder %s35, 1
      %p142 = scmp.ne.s32.totalorder %s137, %s139
      %p143 = scmp.eq.s32.totalorder %s35, 0
      %p144 = por %p142, %p143
      %p145 = scmp.ne.s32.totalorder %s137, %s139
      %p146 = scmp.eq.s32.totalorder %s40, 1
      %p147 = por %p145, %p146
      %p148 = scmp.ne.s32.totalorder %s139, %s140
      %p149 = scmp.eq.s32.totalorder %s40, 0
      %p150 = por %p148, %p149
      %p151 = scmp.ne.s32.totalorder %s139, %s140
      %p152 = scmp.eq.s32.totalorder %s41, 1
      %p153 = por %p151, %p152
      %p155 = scmp.ne.s32.totalorder %s140, %s154
      %p156 = scmp.eq.s32.totalorder %s41, 0
      %p157 = por %p155, %p156
      %s159 = sadd.s32 %s158, 1
      %p162 = scmp.eq.s32.totalorder %s35, 1
      %p163 = scmp.ne.s32.totalorder %s158, %s160
      %p164 = scmp.eq.s32.totalorder %s35, 0
      %p165 = por %p163, %p164
      %p166 = scmp.ne.s32.totalorder %s158, %s160
      %p167 = scmp.eq.s32.totalorder %s40, 1
      %p168 = por %p166, %p167
      %p169 = scmp.ne.s32.totalorder %s160, %s161
      %p170 = scmp.eq.s32.totalorder %s40, 0
      %p171 = por %p169, %p170
      %p172 = scmp.ne.s32.totalorder %s160, %s161
      %p173 = scmp.eq.s32.totalorder %s41, 1
      %p174 = por %p172, %p173
      %p176 = scmp.ne.s32.totalorder %s161, %s175
      %p177 = scmp.eq.s32.totalorder %s41, 0
      %p178 = por %p176, %p177
      %s180 = sadd.s32 %s179, 1
      %p183 = scmp.eq.s32.totalorder %s35, 1
      %p184 = scmp.ne.s32.totalorder %s179, %s181
      %p185 = scmp.eq.s32.totalorder %s35, 0
      %p186 = por %p184, %p185
      %p187 = scmp.ne.s32.totalorder %s179, %s181
      %p188 = scmp.eq.s32.totalorder %s40, 1
      %p189 = por %p187, %p188
      %p190 = scmp.ne.s32.totalorder %s181, %s182
      %p191 = scmp.eq.s32.totalorder %s40, 0
      %p192 = por %p190, %p191
      %p193 = scmp.ne.s32.totalorder %s181, %s182
      %p194 = scmp.eq.s32.totalorder %s41, 1
      %p195 = por %p193, %p194
      %p197 = scmp.ne.s32.totalorder %s182, %s196
      %p198 = scmp.eq.s32.totalorder %s41, 0
      %p199 = por %p197, %p198
      %s201 = sadd.s32 %s200, 1
      %p204 = scmp.eq.s32.totalorder %s35, 1
      %p205 = scmp.ne.s32.totalorder %s200, %s202
      %p206 = scmp.eq.s32.totalorder %s35, 0
      %p207 = por %p205, %p206
      %p208 = scmp.ne.s32.totalorder %s200, %s202
      %p209 = scmp.eq.s32.totalorder %s40, 1
      %p210 = por %p208, %p209
      %p211 = scmp.ne.s32.totalorder %s202, %s203
      %p212 = scmp.eq.s32.totalorder %s40, 0
      %p213 = por %p211, %p212
      %p214 = scmp.ne.s32.totalorder %s202, %s203
      %p215 = scmp.eq.s32.totalorder %s41, 1
      %p216 = por %p214, %p215
      %p218 = scmp.ne.s32.totalorder %s203, %s217
      %p219 = scmp.eq.s32.totalorder %s41, 0
      %p220 = por %p218, %p219
      %s222 = sadd.s32 %s221, 1
      %p225 = scmp.eq.s32.totalorder %s35, 1
      %p226 = scmp.ne.s32.totalorder %s221, %s223
      %p227 = scmp.eq.s32.totalorder %s35, 0
      %p228 = por %p226, %p227
      %p229 = scmp.ne.s32.totalorder %s221, %s223
      %p230 = scmp.eq.s32.totalorder %s40, 1
      %p231 = por %p229, %p230
      %p232 = scmp.ne.s32.totalorder %s223, %s224
      %p233 = scmp.eq.s32.totalorder %s40, 0
      %p234 = por %p232, %p233
      %p235 = scmp.ne.s32.totalorder %s223, %s224
      %p236 = scmp.eq.s32.totalorder %s41, 1
      %p237 = por %p235, %p236
      %p239 = scmp.ne.s32.totalorder %s224, %s238
      %p240 = scmp.eq.s32.totalorder %s41, 0
      %p241 = por %p239, %p240
      %s243 = sadd.s32 %s242, 1
      %p246 = scmp.eq.s32.totalorder %s35, 1
      %p247 = scmp.ne.s32.totalorder %s242, %s244
      %p248 = scmp.eq.s32.totalorder %s35, 0
      %p249 = por %p247, %p248
      %p250 = scmp.ne.s32.totalorder %s242, %s244
      %p251 = scmp.eq.s32.totalorder %s40, 1
      %p252 = por %p250, %p251
      %p253 = scmp.ne.s32.totalorder %s244, %s245
      %p254 = scmp.eq.s32.totalorder %s40, 0
      %p255 = por %p253, %p254
      %p256 = scmp.ne.s32.totalorder %s244, %s245
      %p257 = scmp.eq.s32.totalorder %s41, 1
      %p258 = por %p256, %p257
      %p260 = scmp.ne.s32.totalorder %s245, %s259
      %p261 = scmp.eq.s32.totalorder %s41, 0
      %p262 = por %p260, %p261
      %s264 = sadd.s32 %s263, 1
      %p267 = scmp.eq.s32.totalorder %s35, 1
      %p268 = scmp.ne.s32.totalorder %s263, %s265
      %p269 = scmp.eq.s32.totalorder %s35, 0
      %p270 = por %p268, %p269
      %p271 = scmp.ne.s32.totalorder %s263, %s265
      %p272 = scmp.eq.s32.totalorder %s40, 1
      %p273 = por %p271, %p272
      %p274 = scmp.ne.s32.totalorder %s265, %s266
      %p275 = scmp.eq.s32.totalorder %s40, 0
      %p276 = por %p274, %p275
      %p277 = scmp.ne.s32.totalorder %s265, %s266
      %p278 = scmp.eq.s32.totalorder %s41, 1
      %p279 = por %p277, %p278
      %p281 = scmp.ne.s32.totalorder %s266, %s280
      %p282 = scmp.eq.s32.totalorder %s41, 0
      %p283 = por %p281, %p282
      %s285 = sadd.s32 %s284, 1
      %p288 = scmp.eq.s32.totalorder %s35, 1
      %p289 = scmp.ne.s32.totalorder %s284, %s286
      %p290 = scmp.eq.s32.totalorder %s35, 0
      %p291 = por %p289, %p290
      %p292 = scmp.ne.s32.totalorder %s284, %s286
      %p293 = scmp.eq.s32.totalorder %s40, 1
      %p294 = por %p292, %p293
      %p295 = scmp.ne.s32.totalorder %s286, %s287
      %p296 = scmp.eq.s32.totalorder %s40, 0
      %p297 = por %p295, %p296
      %p298 = scmp.ne.s32.totalorder %s286, %s287
      %p299 = scmp.eq.s32.totalorder %s41, 1
      %p300 = por %p298, %p299
      %p302 = scmp.ne.s32.totalorder %s287, %s301
      %p303 = scmp.eq.s32.totalorder %s41, 0
      %p304 = por %p302, %p303
      %s306 = sadd.s32 %s305, 1
      %p309 = scmp.eq.s32.totalorder %s35, 1
      %p310 = scmp.ne.s32.totalorder %s305, %s307
      %p311 = scmp.eq.s32.totalorder %s35, 0
      %p312 = por %p310, %p311
      %p313 = scmp.ne.s32.totalorder %s305, %s307
      %p314 = scmp.eq.s32.totalorder %s40, 1
      %p315 = por %p313, %p314
      %p316 = scmp.ne.s32.totalorder %s307, %s308
      %p317 = scmp.eq.s32.totalorder %s40, 0
      %p318 = por %p316, %p317
      %p319 = scmp.ne.s32.totalorder %s307, %s308
      %p320 = scmp.eq.s32.totalorder %s41, 1
      %p321 = por %p319, %p320
      %p323 = scmp.ne.s32.totalorder %s308, %s322
      %p324 = scmp.eq.s32.totalorder %s41, 0
      %p325 = por %p323, %p324
      %s327 = sadd.s32 %s326, 1
      %p330 = scmp.eq.s32.totalorder %s35, 1
      %p331 = scmp.ne.s32.totalorder %s326, %s328
      %p332 = scmp.eq.s32.totalorder %s35, 0
      %p333 = por %p331, %p332
      %p334 = scmp.ne.s32.totalorder %s326, %s328
      %p335 = scmp.eq.s32.totalorder %s40, 1
      %p336 = por %p334, %p335
      %p337 = scmp.ne.s32.totalorder %s328, %s329
      %p338 = scmp.eq.s32.totalorder %s40, 0
      %p339 = por %p337, %p338
      %p340 = scmp.ne.s32.totalorder %s328, %s329
      %p341 = scmp.eq.s32.totalorder %s41, 1
      %p342 = por %p340, %p341
      %p344 = scmp.ne.s32.totalorder %s329, %s343
      %p345 = scmp.eq.s32.totalorder %s41, 0
      %p346 = por %p344, %p345
      %s348 = sadd.s32 %s347, 1
      %p351 = scmp.eq.s32.totalorder %s35, 1
      %p352 = scmp.ne.s32.totalorder %s347, %s349
      %p353 = scmp.eq.s32.totalorder %s35, 0
      %p354 = por %p352, %p353
      %p355 = scmp.ne.s32.totalorder %s347, %s349
      %p356 = scmp.eq.s32.totalorder %s40, 1
      %p357 = por %p355, %p356
      %p358 = scmp.ne.s32.totalorder %s349, %s350
      %p359 = scmp.eq.s32.totalorder %s40, 0
      %p360 = por %p358, %p359
      %p361 = scmp.ne.s32.totalorder %s349, %s350
      %p362 = scmp.eq.s32.totalorder %s41, 1
      %p363 = por %p361, %p362
      %p365 = scmp.ne.s32.totalorder %s350, %s364
      %p366 = scmp.eq.s32.totalorder %s41, 0
      %p367 = por %p365, %p366
      %s368 = ssub.s32 %s42, %s54
      %s369 = ssub.s32 %s43, %s50
      %s370 = sor.u32 %s368, %s369
      %p371 = scmp.eq.s32.totalorder %s370, 0
      %s373 = sadd.s32 %s372, 1
      %s374 = scalar_select %p371, %s372, %s373
      %p377 = pneg %p371
      %p378 = scmp.eq.s32.totalorder %s35, 1
      %p379 = por %p377, %p378
      %p380 = scmp.ne.s32.totalorder %s372, %s375
      %p381 = scmp.eq.s32.totalorder %s35, 0
      %p382 = por %p380, %p381
      %p383 = scmp.ne.s32.totalorder %s372, %s375
      %p384 = scmp.eq.s32.totalorder %s40, 1
      %p385 = por %p383, %p384
      %p386 = scmp.ne.s32.totalorder %s375, %s376
      %p387 = scmp.eq.s32.totalorder %s40, 0
      %p388 = por %p386, %p387
      %p389 = scmp.ne.s32.totalorder %s375, %s376
      %p390 = scmp.eq.s32.totalorder %s41, 1
      %p391 = por %p389, %p390
      %p393 = scmp.ne.s32.totalorder %s376, %s392
      %p394 = scmp.eq.s32.totalorder %s41, 0
      %p395 = por %p393, %p394
      %s396 = ssub.s32 %s42, %s54
      %s397 = ssub.s32 %s43, %s50
      %s398 = sor.u32 %s396, %s397
      %p399 = scmp.eq.s32.totalorder %s398, 0
      %s401 = sadd.s32 %s400, 1
      %s402 = scalar_select %p399, %s400, %s401
      %p405 = pneg %p399
      %p406 = scmp.eq.s32.totalorder %s35, 1
      %p407 = por %p405, %p406
      %p408 = scmp.ne.s32.totalorder %s400, %s403
      %p409 = scmp.eq.s32.totalorder %s35, 0
      %p410 = por %p408, %p409
      %p411 = scmp.ne.s32.totalorder %s400, %s403
      %p412 = scmp.eq.s32.totalorder %s40, 1
      %p413 = por %p411, %p412
      %p414 = scmp.ne.s32.totalorder %s403, %s404
      %p415 = scmp.eq.s32.totalorder %s40, 0
      %p416 = por %p414, %p415
      %p417 = scmp.ne.s32.totalorder %s403, %s404
      %p418 = scmp.eq.s32.totalorder %s41, 1
      %p419 = por %p417, %p418
      %p421 = scmp.ne.s32.totalorder %s404, %s420
      %p422 = scmp.eq.s32.totalorder %s41, 0
      %p423 = por %p421, %p422
      %p424 = scmp.le.s32.totalorder 1, %s35
      %p425 = scmp.lt.s32.totalorder %s35, 3
      %p426 = pnand %p424, %p425
      %p427 = pneg %p426
      // Predicated region
      $region9: #{tpu_custom_call.1} parent=5 // pred_check
        _
      $region10: #{tpu_custom_call.1} parent=5 // pred_check_branch
        %429 = sbr.rel (%p426) target = $region12
      $region11: #{tpu_custom_call.1} parent=5 // pred_region
        %s430 = ssub.s32 %s35, 1
        // Predicated region
        $region13: #{tpu_custom_call.1} parent=11 // pred_check
          %p431 = pneg %p150
        $region14: #{tpu_custom_call.1} parent=11 // pred_check_branch
          %433 = sbr.rel (%p431) target = $region16
        $region15: #{tpu_custom_call.1} parent=11 // pred_region
          _
        $region16: #{tpu_custom_call.1} parent=11 // pred_fallthru
          _
        // Predicated region
        $region17: #{tpu_custom_call.1} parent=11 // pred_check
          %p434 = pneg %p171
        $region18: #{tpu_custom_call.1} parent=11 // pred_check_branch
          %436 = sbr.rel (%p434) target = $region20
        $region19: #{tpu_custom_call.1} parent=11 // pred_region
          _
        $region20: #{tpu_custom_call.1} parent=11 // pred_fallthru
          _
        // Predicated region
        $region21: #{tpu_custom_call.1} parent=11 // pred_check
          %p437 = pneg %p192
        $region22: #{tpu_custom_call.1} parent=11 // pred_check_branch
          %439 = sbr.rel (%p437) target = $region24
        $region23: #{tpu_custom_call.1} parent=11 // pred_region
          %s441 = ssub.s32 256, 256
          %442 = vsyncadd [#allocation7], %s441
          %s443 = sshll.u32 [#allocation8], 4
          %s444 = int_to_ptr.vmem [resolvable:$true] %s443
          %449 = dma.hbm_to_vmem [thread:$0]  %s5, 256, %s444, [#allocation7], 64, 64, 4
        $region24: #{tpu_custom_call.1} parent=11 // pred_fallthru
          _
        // Predicated region
        $region25: #{tpu_custom_call.1} parent=11 // pred_check
          %p450 = pneg %p213
        $region26: #{tpu_custom_call.1} parent=11 // pred_check_branch
          %452 = sbr.rel (%p450) target = $region28
        $region27: #{tpu_custom_call.1} parent=11 // pred_region
          _
        $region28: #{tpu_custom_call.1} parent=11 // pred_fallthru
          _
        // Predicated region
        $region29: #{tpu_custom_call.1} parent=11 // pred_check
          %p453 = pneg %p234
        $region30: #{tpu_custom_call.1} parent=11 // pred_check_branch
          %455 = sbr.rel (%p453) target = $region32
        $region31: #{tpu_custom_call.1} parent=11 // pred_region
          _
        $region32: #{tpu_custom_call.1} parent=11 // pred_fallthru
          _
        // Predicated region
        $region33: #{tpu_custom_call.1} parent=11 // pred_check
          %p456 = pneg %p255
        $region34: #{tpu_custom_call.1} parent=11 // pred_check_branch
          %458 = sbr.rel (%p456) target = $region36
        $region35: #{tpu_custom_call.1} parent=11 // pred_region
          %s460 = ssub.s32 256, 256
          %461 = vsyncadd [#allocation10], %s460
          %s462 = sshll.u32 [#allocation9], 4
          %s463 = int_to_ptr.vmem [resolvable:$true] %s462
          %468 = dma.hbm_to_vmem [thread:$0]  %s8, 256, %s463, [#allocation10], 64, 64, 4
        $region36: #{tpu_custom_call.1} parent=11 // pred_fallthru
          _
        // Predicated region
        $region37: #{tpu_custom_call.1} parent=11 // pred_check
          %p469 = pneg %p276
        $region38: #{tpu_custom_call.1} parent=11 // pred_check_branch
          %471 = sbr.rel (%p469) target = $region40
        $region39: #{tpu_custom_call.1} parent=11 // pred_region
          _
        $region40: #{tpu_custom_call.1} parent=11 // pred_fallthru
          _
        // Predicated region
        $region41: #{tpu_custom_call.1} parent=11 // pred_check
          %p472 = pneg %p297
        $region42: #{tpu_custom_call.1} parent=11 // pred_check_branch
          %474 = sbr.rel (%p472) target = $region44
        $region43: #{tpu_custom_call.1} parent=11 // pred_region
          _
        $region44: #{tpu_custom_call.1} parent=11 // pred_fallthru
          _
        // Predicated region
        $region45: #{tpu_custom_call.1} parent=11 // pred_check
          %p475 = pneg %p318
        $region46: #{tpu_custom_call.1} parent=11 // pred_check_branch
          %477 = sbr.rel (%p475) target = $region48
        $region47: #{tpu_custom_call.1} parent=11 // pred_region
          _
        $region48: #{tpu_custom_call.1} parent=11 // pred_fallthru
          _
        // Predicated region
        $region49: #{tpu_custom_call.1} parent=11 // pred_check
          %p478 = pneg %p339
        $region50: #{tpu_custom_call.1} parent=11 // pred_check_branch
          %480 = sbr.rel (%p478) target = $region52
        $region51: #{tpu_custom_call.1} parent=11 // pred_region
          _
        $region52: #{tpu_custom_call.1} parent=11 // pred_fallthru
          _
        // Predicated region
        $region53: #{tpu_custom_call.1} parent=11 // pred_check
          %p481 = pneg %p360
        $region54: #{tpu_custom_call.1} parent=11 // pred_check_branch
          %483 = sbr.rel (%p481) target = $region56
        $region55: #{tpu_custom_call.1} parent=11 // pred_region
          _
        $region56: #{tpu_custom_call.1} parent=11 // pred_fallthru
          _
      $region12: #{tpu_custom_call.1} parent=5 // pred_fallthru
        _
      %p484 = scmp.lt.s32.totalorder %s35, 2
      // Predicated region
      $region57: #{tpu_custom_call.1} parent=5 // pred_check
        %p485 = pneg %p484
      $region58: #{tpu_custom_call.1} parent=5 // pred_check_branch
        %487 = sbr.rel (%p485) target = $region60
      $region59: #{tpu_custom_call.1} parent=5 // pred_region
        // Predicated region
        $region61: #{tpu_custom_call.1} parent=59 // pred_check
          %p488 = pneg %p69
        $region62: #{tpu_custom_call.1} parent=59 // pred_check_branch
          %490 = sbr.rel (%p488) target = $region64
        $region63: #{tpu_custom_call.1} parent=59 // pred_region
          %s491 = sand.u32 %s59, 1
          %s492 = scalar_lea.sflag [#allocation4], %s491
          %s493 = sand.u32 %s59, 1
          %s494 = smul.addr %s493, 4
          %s495 = scalar_lea.vmem [#allocation3], %s494
          %s497 = ssub.s32 64, 64
          %498 = vsyncadd %s492, %s497
          %s499 = sadd.s32 %s43, %s42
          %s500 = smul.addr %s499, 64
          %s501 = scalar_lea.hbm %s0, %s500
          %s503 = sshll.u32 %s495, 4
          %s504 = int_to_ptr.vmem [resolvable:$true] %s503
          %506 = dma.hbm_to_vmem [thread:$0]  %s501, 64, %s504, %s492
        $region64: #{tpu_custom_call.1} parent=59 // pred_fallthru
          _
        // Predicated region
        $region65: #{tpu_custom_call.1} parent=59 // pred_check
          %p507 = pneg %p95
        $region66: #{tpu_custom_call.1} parent=59 // pred_check_branch
          %509 = sbr.rel (%p507) target = $region68
        $region67: #{tpu_custom_call.1} parent=59 // pred_region
          %s510 = sand.u32 %s35, 1
          %s511 = scalar_lea.sflag [#allocation7], %s510
          %s512 = sand.u32 %s85, 1
          %s513 = smul.addr %s512, 4
          %s514 = scalar_lea.vmem [#allocation6], %s513
          %s516 = ssub.s32 64, 64
          %517 = vsyncadd %s511, %s516
          %s518 = smul.addr %s42, 64
          %s519 = scalar_lea.hbm %s1, %s518
          %s521 = sshll.u32 %s514, 4
          %s522 = int_to_ptr.vmem [resolvable:$true] %s521
          %524 = dma.hbm_to_vmem [thread:$0]  %s519, 64, %s522, %s511
        $region68: #{tpu_custom_call.1} parent=59 // pred_fallthru
          _
        // Predicated region
        $region69: #{tpu_custom_call.1} parent=59 // pred_check
          %p525 = pneg %p123
        $region70: #{tpu_custom_call.1} parent=59 // pred_check_branch
          %527 = sbr.rel (%p525) target = $region72
        $region71: #{tpu_custom_call.1} parent=59 // pred_region
          %p528 = scmp.lt.s32.totalorder %s42, 1
          %s529 = scalar_select %p528, %s42, 1
          %p530 = scmp.lt.s32.totalorder %s43, 0
          %s531 = scalar_select %p530, %s43, 0
          %s532 = sadd.s32 %s531, %s529
          %s533 = smul.addr %s532, 8
          %s534 = scalar_lea.vmem %s2, %s533
        $region72: #{tpu_custom_call.1} parent=59 // pred_fallthru
          _
      $region60: #{tpu_custom_call.1} parent=5 // pred_fallthru
        _
      %p535 = scmp.le.s32.totalorder 1, %s35
      %p536 = scmp.lt.s32.totalorder %s35, 3
      %p537 = pnand %p535, %p536
      %p538 = pneg %p537
      // Predicated region
      $region73: #{tpu_custom_call.1} parent=5 // pred_check
        _
      $region74: #{tpu_custom_call.1} parent=5 // pred_check_branch
        %540 = sbr.rel (%p537) target = $region76
      $region75: #{tpu_custom_call.1} parent=5 // pred_region
        %s541 = ssub.s32 %s35, 1
        %s542 = sand.u32 %s62, 1
        %s543 = scalar_lea.sflag [#allocation4], %s542
        %s544 = sand.u32 %s62, 1
        %s545 = smul.addr %s544, 4
        %s546 = scalar_lea.vmem [#allocation3], %s545
        // Predicated region
        $region77: #{tpu_custom_call.1} parent=75 // pred_check
          %p547 = pneg %p75
        $region78: #{tpu_custom_call.1} parent=75 // pred_check_branch
          %549 = sbr.rel (%p547) target = $region80
        $region79: #{tpu_custom_call.1} parent=75 // pred_region
          %550 = dma.done %s543, 64
        $region80: #{tpu_custom_call.1} parent=75 // pred_fallthru
          _
        %s551 = sand.u32 %s40, 1
        %s552 = scalar_lea.sflag [#allocation7], %s551
        %s553 = sand.u32 %s88, 1
        %s554 = smul.addr %s553, 4
        %s555 = scalar_lea.vmem [#allocation6], %s554
        // Predicated region
        $region81: #{tpu_custom_call.1} parent=75 // pred_check
          %p556 = pneg %p101
        $region82: #{tpu_custom_call.1} parent=75 // pred_check_branch
          %558 = sbr.rel (%p556) target = $region84
        $region83: #{tpu_custom_call.1} parent=75 // pred_region
          %559 = dma.done %s552, 64
        $region84: #{tpu_custom_call.1} parent=75 // pred_fallthru
          _
        // Predicated region
        $region85: #{tpu_custom_call.1} parent=75 // pred_check
          %p560 = pneg %p192
        $region86: #{tpu_custom_call.1} parent=75 // pred_check_branch
          %562 = sbr.rel (%p560) target = $region88
        $region87: #{tpu_custom_call.1} parent=75 // pred_region
          %563 = dma.done [#allocation7], 256
        $region88: #{tpu_custom_call.1} parent=75 // pred_fallthru
          _
        // Predicated region
        $region89: #{tpu_custom_call.1} parent=75 // pred_check
          %p564 = pneg %p255
        $region90: #{tpu_custom_call.1} parent=75 // pred_check_branch
          %566 = sbr.rel (%p564) target = $region92
        $region91: #{tpu_custom_call.1} parent=75 // pred_region
          %567 = dma.done [#allocation10], 256
        $region92: #{tpu_custom_call.1} parent=75 // pred_fallthru
          _
        %s568 = sand.u32 %s62, 1
        %s569 = scalar_lea.sflag [#allocation4], %s568
        %s570 = sand.u32 %s62, 1
        %s571 = smul.addr %s570, 4
        %s572 = scalar_lea.vmem [#allocation3], %s571
        %p573 = pneg %p75
        %p574 = pneg %p72
        %s575 = sand.u32 %s40, 1
        %s576 = scalar_lea.sflag [#allocation7], %s575
        %s577 = sand.u32 %s88, 1
        %s578 = smul.addr %s577, 4
        %s579 = scalar_lea.vmem [#allocation6], %s578
        %p580 = pneg %p101
        %p581 = pneg %p98
        %p582 = scmp.lt.s32.totalorder %s44, 1
        %s583 = scalar_select %p582, %s44, 1
        %p584 = scmp.lt.s32.totalorder %s45, 0
        %s585 = scalar_select %p584, %s45, 0
        %s586 = sadd.s32 %s585, %s583
        %s587 = smul.addr %s586, 8
        %s588 = scalar_lea.vmem %s2, %s587
        %p589 = pneg %p129
        %p590 = pneg %p126
        %p591 = pneg %p150
        %p592 = pneg %p147
        %p593 = pneg %p171
        %p594 = pneg %p168
        %p595 = pneg %p192
        %p596 = pneg %p189
        %p597 = pneg %p213
        %p598 = pneg %p210
        %p599 = pneg %p234
        %p600 = pneg %p231
        %p601 = pneg %p255
        %p602 = pneg %p252
        %p603 = pneg %p276
        %p604 = pneg %p273
        %p605 = pneg %p297
        %p606 = pneg %p294
        %p607 = pneg %p318
        %p608 = pneg %p315
        %p609 = pneg %p339
        %p610 = pneg %p336
        %p611 = pneg %p360
        %p612 = pneg %p357
        %p613 = pneg %p388
        %p614 = pneg %p385
        %s615 = sand.u32 %s375, 1
        %s616 = scalar_lea.sflag [#allocation5], %s615
        %s617 = sand.u32 %s375, 1
        %s618 = smul.addr %s617, 8
        %s619 = scalar_lea.vmem [#allocation11], %s618
        %p620 = pneg %p416
        %p621 = pneg %p413
        %s622 = sand.u32 %s403, 1
        %s623 = scalar_lea.sflag [#allocation13], %s622
        %s624 = sand.u32 %s403, 1
        %s625 = smul.addr %s624, 32
        %s626 = scalar_lea.vmem [#allocation12], %s625
        %p627 = scmp.lt.s32.totalorder %s44, 1
        %s628 = scalar_select %p627, %s44, 1
        %p629 = scmp.lt.s32.totalorder %s45, 0
        %s630 = scalar_select %p629, %s45, 0
        %s631 = sadd.s32 %s630, %s628
        %s632 = smul.addr %s631, 8
        %s633 = scalar_lea.vmem %s2, %s632
        %p635 = scmp.eq.s32.totalorder %s45, 0
        // Predicated region
        $region93: #{tpu_custom_call.1} parent=75 // pred_check
          %p636 = pneg %p635
        $region94: #{tpu_custom_call.1} parent=75 // pred_check_branch
          %638 = sbr.rel (%p636) target = $region96
        $region95: #{tpu_custom_call.1} parent=75 // pred_region
          %v639 = vld [vmem:[%s555] sm:$0xf]
          %v640 = vld [vmem:[%s4] sm:$0xf]
          %v641 = vld [vmem:[%s4 + $0x4] sm:$0xf]
          %v642 = vld [vmem:[%s4 + $0x8] sm:$0xf]
          %v643 = vld [vmem:[%s4 + $0xc] sm:$0xf]
          %v648 = vunpack.c.l.b16 %v640
          %v649 = vunpack.c.l.b16 %v641
          %v650 = vunpack.c.l.b16 %v642
          %v651 = vunpack.c.l.b16 %v643
          %v652 = vpack.c.b16 %v649, %v648
          %v653 = vpack.c.b16 %v651, %v650
          %vm656 = vcmask 261120
          %v658 = vsel %vm656, %v639, 0
          %660 = vmatprep.subr.bf16.mxu0 0
          %661 = vmatpush1.bf16.msra.mxu0 %v652
          %662 = vmatprep.subr.bf16.mxu0 0
          %663 = vmatpush1.bf16.msra.mxu0 %v653
          %664 = vmatprep.subr.bf16.mxu0 0
          %665 = vmatpush1.bf16.msra.mxu0 0
          %666 = vmatprep.subr.bf16.mxu0 0
          %667 = vmatpush1.bf16.msra.mxu0 0
          %668 = vmatprep.subr.bf16.mxu0 0
          %669 = vmatpush1.bf16.msra.mxu0 0
          %670 = vmatprep.subr.bf16.mxu0 0
          %671 = vmatpush1.bf16.msra.mxu0 0
          %672 = vmatprep.subr.bf16.mxu0 0
          %673 = vmatpush1.bf16.msra.mxu0 0
          %674 = vmatprep.subr.bf16.mxu0 0
          %675 = vmatpush1.bf16.msra.mxu0 0
          %676 = vmatprep.subr.bf16.mxu0 0
          %677 = vmatpush1.bf16.msra.mxu0 0
          %678 = vmatprep.subr.bf16.mxu0 0
          %679 = vmatpush1.bf16.msra.mxu0 0
          %680 = vmatprep.subr.bf16.mxu0 0
          %681 = vmatpush1.bf16.msra.mxu0 0
          %682 = vmatprep.subr.bf16.mxu0 0
          %683 = vmatpush1.bf16.msra.mxu0 0
          %684 = vmatprep.subr.bf16.mxu0 0
          %685 = vmatpush1.bf16.msra.mxu0 0
          %686 = vmatprep.subr.bf16.mxu0 0
          %687 = vmatpush1.bf16.msra.mxu0 0
          %688 = vmatprep.subr.bf16.mxu0 0
          %689 = vmatpush1.bf16.msra.mxu0 0
          %690 = vmatprep.subr.bf16.mxu0 0
          %691 = vmatpush1.bf16.msra.mxu0 0
          %692 = vmatprep.mubr.bf16.mxu0 0
          %693 = vmatmul.mubr.bf16.gmra.mrb[0].mxu0 %v658
          %v694 = vpop.f32.mrb[0].mxu0
          %v695 = vadd.f32 0.0, %v694
          %v696 = vpop.f32.mrb[0].mxu0
          %v697 = vpop.f32.mrb[0].mxu0
          %v698 = vpop.f32.mrb[0].mxu0
          %699 = vdwg.mxu0
          %v700 = vpack.c.bf16 %v695, %v695
          %vm701 = vcmask 519168
          %702 = vst.msk [vmem:[#allocation2] sm:$0xf] %vm701, %v700
        $region96: #{tpu_custom_call.1} parent=75 // pred_fallthru
          _
        %v703 = vld [vmem:[%s546] sm:$0xf]
        %v704 = vunpack.c.l.bf16 %v703
        %v705 = vld [vmem:[%s3] sm:$0xf]
        %v706 = vld [vmem:[%s3 + $0x4] sm:$0xf]
        %v707 = vld [vmem:[%s3 + $0x8] sm:$0xf]
        %v708 = vld [vmem:[%s3 + $0xc] sm:$0xf]
        %v713 = vunpack.c.l.b16 %v705
        %v714 = vunpack.c.l.b16 %v706
        %v715 = vunpack.c.l.b16 %v707
        %v716 = vunpack.c.l.b16 %v708
        %v717 = vpack.c.b16 %v714, %v713
        %v718 = vpack.c.b16 %v716, %v715
        %vm721 = vcmask 261120
        %v723 = vsel %vm721, %v703, 0
        %725 = vmatprep.subr.bf16.mxu0 0
        %726 = vmatpush1.bf16.msra.mxu0 %v717
        %727 = vmatprep.subr.bf16.mxu0 0
        %728 = vmatpush1.bf16.msra.mxu0 %v718
        %729 = vmatprep.subr.bf16.mxu0 0
        %730 = vmatpush1.bf16.msra.mxu0 0
        %731 = vmatprep.subr.bf16.mxu0 0
        %732 = vmatpush1.bf16.msra.mxu0 0
        %733 = vmatprep.subr.bf16.mxu0 0
        %734 = vmatpush1.bf16.msra.mxu0 0
        %735 = vmatprep.subr.bf16.mxu0 0
        %736 = vmatpush1.bf16.msra.mxu0 0
        %737 = vmatprep.subr.bf16.mxu0 0
        %738 = vmatpush1.bf16.msra.mxu0 0
        %739 = vmatprep.subr.bf16.mxu0 0
        %740 = vmatpush1.bf16.msra.mxu0 0
        %741 = vmatprep.subr.bf16.mxu0 0
        %742 = vmatpush1.bf16.msra.mxu0 0
        %743 = vmatprep.subr.bf16.mxu0 0
        %744 = vmatpush1.bf16.msra.mxu0 0
        %745 = vmatprep.subr.bf16.mxu0 0
        %746 = vmatpush1.bf16.msra.mxu0 0
        %747 = vmatprep.subr.bf16.mxu0 0
        %748 = vmatpush1.bf16.msra.mxu0 0
        %749 = vmatprep.subr.bf16.mxu0 0
        %750 = vmatpush1.bf16.msra.mxu0 0
        %751 = vmatprep.subr.bf16.mxu0 0
        %752 = vmatpush1.bf16.msra.mxu0 0
        %753 = vmatprep.subr.bf16.mxu0 0
        %754 = vmatpush1.bf16.msra.mxu0 0
        %755 = vmatprep.subr.bf16.mxu0 0
        %756 = vmatpush1.bf16.msra.mxu0 0
        %757 = vmatprep.mubr.bf16.mxu0 0
        %758 = vmatmul.mubr.bf16.gmra.mrb[0].mxu0 %v723
        %v759 = vpop.f32.mrb[0].mxu0
        %v760 = vadd.f32 0.0, %v759
        %v761 = vpop.f32.mrb[0].mxu0
        %v762 = vpop.f32.mrb[0].mxu0
        %v763 = vpop.f32.mrb[0].mxu0
        %764 = vdwg.mxu0
        %v765 = vmul.f32 %v760, 0.35355338
        %v766 = vpack.c.bf16 %v765, %v765
        %v767 = vld [vmem:[#allocation2] sm:$0xf]
        %v768 = vld [vmem:[#allocation8] sm:$0xf]
        %v769 = vld [vmem:[#allocation8 + $0x4] sm:$0xf]
        %v770 = vld [vmem:[#allocation8 + $0x8] sm:$0xf]
        %v771 = vld [vmem:[#allocation8 + $0xc] sm:$0xf]
        %v772 = vld [vmem:[%s633] sm:$0xff]
        %vm773 = vcmp.ne.s32.totalorder %v772, 0
        %vm774 = vcmask 64512
        %v776 = vsel %vm774, %v766, 0
        %v779 = vsel %vm774, %v767, 0
        %781 = vmatprep.subr.bf16.mxu0 0
        %782 = vmatpush1.bf16.xpose.msra.mxu0 %v779
        %783 = vmatprep.subr.bf16.mxu0 0
        %784 = vmatpush1.bf16.xpose.msra.mxu0 0
        %785 = vmatprep.subr.bf16.mxu0 0
        %786 = vmatpush1.bf16.xpose.msra.mxu0 0
        %787 = vmatprep.subr.bf16.mxu0 0
        %788 = vmatpush1.bf16.xpose.msra.mxu0 0
        %789 = vmatprep.subr.bf16.mxu0 0
        %790 = vmatpush1.bf16.xpose.msra.mxu0 0
        %791 = vmatprep.subr.bf16.mxu0 0
        %792 = vmatpush1.bf16.xpose.msra.mxu0 0
        %793 = vmatprep.subr.bf16.mxu0 0
        %794 = vmatpush1.bf16.xpose.msra.mxu0 0
        %795 = vmatprep.subr.bf16.mxu0 0
        %796 = vmatpush1.bf16.xpose.msra.mxu0 0
        %797 = vmatprep.subr.bf16.mxu0 0
        %798 = vmatpush1.bf16.xpose.msra.mxu0 0
        %799 = vmatprep.subr.bf16.mxu0 0
        %800 = vmatpush1.bf16.xpose.msra.mxu0 0
        %801 = vmatprep.subr.bf16.mxu0 0
        %802 = vmatpush1.bf16.xpose.msra.mxu0 0
        %803 = vmatprep.subr.bf16.mxu0 0
        %804 = vmatpush1.bf16.xpose.msra.mxu0 0
        %805 = vmatprep.subr.bf16.mxu0 0
        %806 = vmatpush1.bf16.xpose.msra.mxu0 0
        %807 = vmatprep.subr.bf16.mxu0 0
        %808 = vmatpush1.bf16.xpose.msra.mxu0 0
        %809 = vmatprep.subr.bf16.mxu0 0
        %810 = vmatpush1.bf16.xpose.msra.mxu0 0
        %811 = vmatprep.subr.bf16.mxu0 0
        %812 = vmatpush1.bf16.xpose.msra.mxu0 0
        %813 = vmatprep.mubr.bf16.mxu0 0
        %814 = vmatmul.mubr.bf16.gmra.mrb[0].mxu0 %v776
        %v815 = vpop.f32.mrb[0].mxu0
        %v816 = vadd.f32 0.0, %v815
        %v817 = vpop.f32.mrb[0].mxu0
        %v818 = vpop.f32.mrb[0].mxu0
        %v819 = vpop.f32.mrb[0].mxu0
        %820 = vdwg.mxu0
        %v821 = vsel %vm773, %v816, -1e+09
        %v822 = vsel %vm774, %v821, -inf
        %823 = vmax.xlane.f32.xlu0 %v822
        %v824 = vpop.xlane.xlu0 %823
        %v825 = vsub.f32 %v821, %v824
        %v826 = vmul.f32 %v825, 1.442695
        %v827 = vpow.pop %v826
        %v828 = vsel %vm774, %v827, 0.0
        %829 = vadd.xlane.f32.xlu0 %v828
        %v830 = vpop.xlane.xlu0 %829
        %v831 = vrcp.pop %v830
        %v832 = vmul.f32 %v827, %v831
        %833 = vst.msk [vmem:[%s626] sm:$0xff] %vm774, %v832
        %v834 = vpack.c.bf16 %v832, %v832
        %v836 = vunpack.c.l.b16 %v767
        %v837 = vpack.c.b16 %v836, %v836
        %838 = vrot.lane.b32.xlu0 %v837, 96
        %v839 = vpop.permute.xlu0 %838
        %v841 = vsel %vm774, %v834, 0
        %vm843 = vcmask 1043456
        %v845 = vsel %vm843, %v839, 0
        %847 = vmatprep.subr.bf16.mxu0 0
        %848 = vmatpush1.bf16.msra.mxu0 %v845
        %849 = vmatprep.subr.bf16.mxu0 0
        %850 = vmatpush1.bf16.msra.mxu0 0
        %851 = vmatprep.subr.bf16.mxu0 0
        %852 = vmatpush1.bf16.msra.mxu0 0
        %853 = vmatprep.subr.bf16.mxu0 0
        %854 = vmatpush1.bf16.msra.mxu0 0
        %855 = vmatprep.subr.bf16.mxu0 0
        %856 = vmatpush1.bf16.msra.mxu0 0
        %857 = vmatprep.subr.bf16.mxu0 0
        %858 = vmatpush1.bf16.msra.mxu0 0
        %859 = vmatprep.subr.bf16.mxu0 0
        %860 = vmatpush1.bf16.msra.mxu0 0
        %861 = vmatprep.subr.bf16.mxu0 0
        %862 = vmatpush1.bf16.msra.mxu0 0
        %863 = vmatprep.subr.bf16.mxu0 0
        %864 = vmatpush1.bf16.msra.mxu0 0
        %865 = vmatprep.subr.bf16.mxu0 0
        %866 = vmatpush1.bf16.msra.mxu0 0
        %867 = vmatprep.subr.bf16.mxu0 0
        %868 = vmatpush1.bf16.msra.mxu0 0
        %869 = vmatprep.subr.bf16.mxu0 0
        %870 = vmatpush1.bf16.msra.mxu0 0
        %871 = vmatprep.subr.bf16.mxu0 0
        %872 = vmatpush1.bf16.msra.mxu0 0
        %873 = vmatprep.subr.bf16.mxu0 0
        %874 = vmatpush1.bf16.msra.mxu0 0
        %875 = vmatprep.subr.bf16.mxu0 0
        %876 = vmatpush1.bf16.msra.mxu0 0
        %877 = vmatprep.subr.bf16.mxu0 0
        %878 = vmatpush1.bf16.msra.mxu0 0
        %879 = vmatprep.mubr.bf16.mxu0 0
        %880 = vmatmul.mubr.bf16.gmra.mrb[0].mxu0 %v841
        %v881 = vpop.f32.mrb[0].mxu0
        %v882 = vadd.f32 0.0, %v881
        %v883 = vpop.f32.mrb[0].mxu0
        %v884 = vpop.f32.mrb[0].mxu0
        %v885 = vpop.f32.mrb[0].mxu0
        %886 = vdwg.mxu0
        %v887 = vpack.c.bf16 %v882, %v882
        %v889 = vsel %vm774, %v887, 0
        %v892 = vsel %vm843, %v768, 0
        %894 = vmatprep.subr.bf16.mxu0 0
        %895 = vmatpush1.bf16.msra.mxu0 %v892
        %896 = vmatprep.subr.bf16.mxu0 0
        %897 = vmatpush1.bf16.msra.mxu0 0
        %898 = vmatprep.subr.bf16.mxu0 0
        %899 = vmatpush1.bf16.msra.mxu0 0
        %900 = vmatprep.subr.bf16.mxu0 0
        %901 = vmatpush1.bf16.msra.mxu0 0
        %902 = vmatprep.subr.bf16.mxu0 0
        %903 = vmatpush1.bf16.msra.mxu0 0
        %904 = vmatprep.subr.bf16.mxu0 0
        %905 = vmatpush1.bf16.msra.mxu0 0
        %906 = vmatprep.subr.bf16.mxu0 0
        %907 = vmatpush1.bf16.msra.mxu0 0
        %908 = vmatprep.subr.bf16.mxu0 0
        %909 = vmatpush1.bf16.msra.mxu0 0
        %910 = vmatprep.subr.bf16.mxu0 0
        %911 = vmatpush1.bf16.msra.mxu0 0
        %912 = vmatprep.subr.bf16.mxu0 0
        %913 = vmatpush1.bf16.msra.mxu0 0
        %914 = vmatprep.subr.bf16.mxu0 0
        %915 = vmatpush1.bf16.msra.mxu0 0
        %916 = vmatprep.subr.bf16.mxu0 0
        %917 = vmatpush1.bf16.msra.mxu0 0
        %918 = vmatprep.subr.bf16.mxu0 0
        %919 = vmatpush1.bf16.msra.mxu0 0
        %920 = vmatprep.subr.bf16.mxu0 0
        %921 = vmatpush1.bf16.msra.mxu0 0
        %922 = vmatprep.subr.bf16.mxu0 0
        %923 = vmatpush1.bf16.msra.mxu0 0
        %924 = vmatprep.subr.bf16.mxu0 0
        %925 = vmatpush1.bf16.msra.mxu0 0
        %926 = vmatprep.mubr.bf16.mxu0 0
        %927 = vmatmul.mubr.bf16.gmra.mrb[0].mxu0 %v889
        %v928 = vpop.f32.mrb[0].mxu0
        %v929 = vadd.f32 0.0, %v928
        %v930 = vpop.f32.mrb[0].mxu0
        %v931 = vpop.f32.mrb[0].mxu0
        %v932 = vpop.f32.mrb[0].mxu0
        %933 = vdwg.mxu0
        %v934 = vadd.f32 %v704, %v929
        %936 = vrot.lane.b32.xlu0 %v766, 120
        %v937 = vpop.permute.xlu0 %936
        %938 = vrot.lane.b32.xlu0 %v837, 120
        %v939 = vpop.permute.xlu0 %938
        %v941 = vsel %vm774, %v937, 0
        %v944 = vsel %vm774, %v939, 0
        %946 = vmatprep.subr.bf16.mxu0 0
        %947 = vmatpush1.bf16.xpose.msra.mxu0 %v944
        %948 = vmatprep.subr.bf16.mxu0 0
        %949 = vmatpush1.bf16.xpose.msra.mxu0 0
        %950 = vmatprep.subr.bf16.mxu0 0
        %951 = vmatpush1.bf16.xpose.msra.mxu0 0
        %952 = vmatprep.subr.bf16.mxu0 0
        %953 = vmatpush1.bf16.xpose.msra.mxu0 0
        %954 = vmatprep.subr.bf16.mxu0 0
        %955 = vmatpush1.bf16.xpose.msra.mxu0 0
        %956 = vmatprep.subr.bf16.mxu0 0
        %957 = vmatpush1.bf16.xpose.msra.mxu0 0
        %958 = vmatprep.subr.bf16.mxu0 0
        %959 = vmatpush1.bf16.xpose.msra.mxu0 0
        %960 = vmatprep.subr.bf16.mxu0 0
        %961 = vmatpush1.bf16.xpose.msra.mxu0 0
        %962 = vmatprep.subr.bf16.mxu0 0
        %963 = vmatpush1.bf16.xpose.msra.mxu0 0
        %964 = vmatprep.subr.bf16.mxu0 0
        %965 = vmatpush1.bf16.xpose.msra.mxu0 0
        %966 = vmatprep.subr.bf16.mxu0 0
        %967 = vmatpush1.bf16.xpose.msra.mxu0 0
        %968 = vmatprep.subr.bf16.mxu0 0
        %969 = vmatpush1.bf16.xpose.msra.mxu0 0
        %970 = vmatprep.subr.bf16.mxu0 0
        %971 = vmatpush1.bf16.xpose.msra.mxu0 0
        %972 = vmatprep.subr.bf16.mxu0 0
        %973 = vmatpush1.bf16.xpose.msra.mxu0 0
        %974 = vmatprep.subr.bf16.mxu0 0
        %975 = vmatpush1.bf16.xpose.msra.mxu0 0
        %976 = vmatprep.subr.bf16.mxu0 0
        %977 = vmatpush1.bf16.xpose.msra.mxu0 0
        %978 = vmatprep.mubr.bf16.mxu0 0
        %979 = vmatmul.mubr.bf16.gmra.mrb[0].mxu0 %v941
        %v980 = vpop.f32.mrb[0].mxu0
        %v981 = vadd.f32 0.0, %v980
        %v982 = vpop.f32.mrb[0].mxu0
        %v983 = vpop.f32.mrb[0].mxu0
        %v984 = vpop.f32.mrb[0].mxu0
        %985 = vdwg.mxu0
        %v986 = vsel %vm773, %v981, -1e+09
        %v987 = vsel %vm774, %v986, -inf
        %988 = vmax.xlane.f32.xlu0 %v987
        %v989 = vpop.xlane.xlu0 %988
        %v990 = vsub.f32 %v986, %v989
        %v991 = vmul.f32 %v990, 1.442695
        %v992 = vpow.pop %v991
        %v993 = vsel %vm774, %v992, 0.0
        %994 = vadd.xlane.f32.xlu0 %v993
        %v995 = vpop.xlane.xlu0 %994
        %v996 = vrcp.pop %v995
        %v997 = vmul.f32 %v992, %v996
        %s998 = scalar_lea.vmem %s626, 8 [#allocation12]
        %999 = vst.msk [vmem:[%s998] sm:$0xff] %vm774, %v997
        %v1000 = vpack.c.bf16 %v997, %v997
        %1001 = vrot.lane.b32.xlu0 %v837, 88
        %v1002 = vpop.permute.xlu0 %1001
        %v1004 = vsel %vm774, %v1000, 0
        %v1007 = vsel %vm843, %v1002, 0
        %1009 = vmatprep.subr.bf16.mxu0 0
        %1010 = vmatpush1.bf16.msra.mxu0 %v1007
        %1011 = vmatprep.subr.bf16.mxu0 0
        %1012 = vmatpush1.bf16.msra.mxu0 0
        %1013 = vmatprep.subr.bf16.mxu0 0
        %1014 = vmatpush1.bf16.msra.mxu0 0
        %1015 = vmatprep.subr.bf16.mxu0 0
        %1016 = vmatpush1.bf16.msra.mxu0 0
        %1017 = vmatprep.subr.bf16.mxu0 0
        %1018 = vmatpush1.bf16.msra.mxu0 0
        %1019 = vmatprep.subr.bf16.mxu0 0
        %1020 = vmatpush1.bf16.msra.mxu0 0
        %1021 = vmatprep.subr.bf16.mxu0 0
        %1022 = vmatpush1.bf16.msra.mxu0 0
        %1023 = vmatprep.subr.bf16.mxu0 0
        %1024 = vmatpush1.bf16.msra.mxu0 0
        %1025 = vmatprep.subr.bf16.mxu0 0
        %1026 = vmatpush1.bf16.msra.mxu0 0
        %1027 = vmatprep.subr.bf16.mxu0 0
        %1028 = vmatpush1.bf16.msra.mxu0 0
        %1029 = vmatprep.subr.bf16.mxu0 0
        %1030 = vmatpush1.bf16.msra.mxu0 0
        %1031 = vmatprep.subr.bf16.mxu0 0
        %1032 = vmatpush1.bf16.msra.mxu0 0
        %1033 = vmatprep.subr.bf16.mxu0 0
        %1034 = vmatpush1.bf16.msra.mxu0 0
        %1035 = vmatprep.subr.bf16.mxu0 0
        %1036 = vmatpush1.bf16.msra.mxu0 0
        %1037 = vmatprep.subr.bf16.mxu0 0
        %1038 = vmatpush1.bf16.msra.mxu0 0
        %1039 = vmatprep.subr.bf16.mxu0 0
        %1040 = vmatpush1.bf16.msra.mxu0 0
        %1041 = vmatprep.mubr.bf16.mxu0 0
        %1042 = vmatmul.mubr.bf16.gmra.mrb[0].mxu0 %v1004
        %v1043 = vpop.f32.mrb[0].mxu0
        %v1044 = vadd.f32 0.0, %v1043
        %v1045 = vpop.f32.mrb[0].mxu0
        %v1046 = vpop.f32.mrb[0].mxu0
        %v1047 = vpop.f32.mrb[0].mxu0
        %1048 = vdwg.mxu0
        %v1049 = vpack.c.bf16 %v1044, %v1044
        %v1051 = vsel %vm774, %v1049, 0
        %v1054 = vsel %vm843, %v769, 0
        %1056 = vmatprep.subr.bf16.mxu0 0
        %1057 = vmatpush1.bf16.msra.mxu0 %v1054
        %1058 = vmatprep.subr.bf16.mxu0 0
        %1059 = vmatpush1.bf16.msra.mxu0 0
        %1060 = vmatprep.subr.bf16.mxu0 0
        %1061 = vmatpush1.bf16.msra.mxu0 0
        %1062 = vmatprep.subr.bf16.mxu0 0
        %1063 = vmatpush1.bf16.msra.mxu0 0
        %1064 = vmatprep.subr.bf16.mxu0 0
        %1065 = vmatpush1.bf16.msra.mxu0 0
        %1066 = vmatprep.subr.bf16.mxu0 0
        %1067 = vmatpush1.bf16.msra.mxu0 0
        %1068 = vmatprep.subr.bf16.mxu0 0
        %1069 = vmatpush1.bf16.msra.mxu0 0
        %1070 = vmatprep.subr.bf16.mxu0 0
        %1071 = vmatpush1.bf16.msra.mxu0 0
        %1072 = vmatprep.subr.bf16.mxu0 0
        %1073 = vmatpush1.bf16.msra.mxu0 0
        %1074 = vmatprep.subr.bf16.mxu0 0
        %1075 = vmatpush1.bf16.msra.mxu0 0
        %1076 = vmatprep.subr.bf16.mxu0 0
        %1077 = vmatpush1.bf16.msra.mxu0 0
        %1078 = vmatprep.subr.bf16.mxu0 0
        %1079 = vmatpush1.bf16.msra.mxu0 0
        %1080 = vmatprep.subr.bf16.mxu0 0
        %1081 = vmatpush1.bf16.msra.mxu0 0
        %1082 = vmatprep.subr.bf16.mxu0 0
        %1083 = vmatpush1.bf16.msra.mxu0 0
        %1084 = vmatprep.subr.bf16.mxu0 0
        %1085 = vmatpush1.bf16.msra.mxu0 0
        %1086 = vmatprep.subr.bf16.mxu0 0
        %1087 = vmatpush1.bf16.msra.mxu0 0
        %1088 = vmatprep.mubr.bf16.mxu0 0
        %1089 = vmatmul.mubr.bf16.gmra.mrb[0].mxu0 %v1051
        %v1090 = vpop.f32.mrb[0].mxu0
        %v1091 = vadd.f32 0.0, %v1090
        %v1092 = vpop.f32.mrb[0].mxu0
        %v1093 = vpop.f32.mrb[0].mxu0
        %v1094 = vpop.f32.mrb[0].mxu0
        %1095 = vdwg.mxu0
        %v1096 = vadd.f32 %v934, %v1091
        %1097 = vrot.lane.b32.xlu0 %v766, 112
        %v1098 = vpop.permute.xlu0 %1097
        %1099 = vrot.lane.b32.xlu0 %v837, 112
        %v1100 = vpop.permute.xlu0 %1099
        %v1102 = vsel %vm774, %v1098, 0
        %v1105 = vsel %vm774, %v1100, 0
        %1107 = vmatprep.subr.bf16.mxu0 0
        %1108 = vmatpush1.bf16.xpose.msra.mxu0 %v1105
        %1109 = vmatprep.subr.bf16.mxu0 0
        %1110 = vmatpush1.bf16.xpose.msra.mxu0 0
        %1111 = vmatprep.subr.bf16.mxu0 0
        %1112 = vmatpush1.bf16.xpose.msra.mxu0 0
        %1113 = vmatprep.subr.bf16.mxu0 0
        %1114 = vmatpush1.bf16.xpose.msra.mxu0 0
        %1115 = vmatprep.subr.bf16.mxu0 0
        %1116 = vmatpush1.bf16.xpose.msra.mxu0 0
        %1117 = vmatprep.subr.bf16.mxu0 0
        %1118 = vmatpush1.bf16.xpose.msra.mxu0 0
        %1119 = vmatprep.subr.bf16.mxu0 0
        %1120 = vmatpush1.bf16.xpose.msra.mxu0 0
        %1121 = vmatprep.subr.bf16.mxu0 0
        %1122 = vmatpush1.bf16.xpose.msra.mxu0 0
        %1123 = vmatprep.subr.bf16.mxu0 0
        %1124 = vmatpush1.bf16.xpose.msra.mxu0 0
        %1125 = vmatprep.subr.bf16.mxu0 0
        %1126 = vmatpush1.bf16.xpose.msra.mxu0 0
        %1127 = vmatprep.subr.bf16.mxu0 0
        %1128 = vmatpush1.bf16.xpose.msra.mxu0 0
        %1129 = vmatprep.subr.bf16.mxu0 0
        %1130 = vmatpush1.bf16.xpose.msra.mxu0 0
        %1131 = vmatprep.subr.bf16.mxu0 0
        %1132 = vmatpush1.bf16.xpose.msra.mxu0 0
        %1133 = vmatprep.subr.bf16.mxu0 0
        %1134 = vmatpush1.bf16.xpose.msra.mxu0 0
        %1135 = vmatprep.subr.bf16.mxu0 0
        %1136 = vmatpush1.bf16.xpose.msra.mxu0 0
        %1137 = vmatprep.subr.bf16.mxu0 0
        %1138 = vmatpush1.bf16.xpose.msra.mxu0 0
        %1139 = vmatprep.mubr.bf16.mxu0 0
        %1140 = vmatmul.mubr.bf16.gmra.mrb[0].mxu0 %v1102
        %v1141 = vpop.f32.mrb[0].mxu0
        %v1142 = vadd.f32 0.0, %v1141
        %v1143 = vpop.f32.mrb[0].mxu0
        %v1144 = vpop.f32.mrb[0].mxu0
        %v1145 = vpop.f32.mrb[0].mxu0
        %1146 = vdwg.mxu0
        %v1147 = vsel %vm773, %v1142, -1e+09
        %v1148 = vsel %vm774, %v1147, -inf
        %1149 = vmax.xlane.f32.xlu0 %v1148
        %v1150 = vpop.xlane.xlu0 %1149
        %v1151 = vsub.f32 %v1147, %v1150
        %v1152 = vmul.f32 %v1151, 1.442695
        %v1153 = vpow.pop %v1152
        %v1154 = vsel %vm774, %v1153, 0.0
        %1155 = vadd.xlane.f32.xlu0 %v1154
        %v1156 = vpop.xlane.xlu0 %1155
        %v1157 = vrcp.pop %v1156
        %v1158 = vmul.f32 %v1153, %v1157
        %s1159 = scalar_lea.vmem %s626, 16 [#allocation12]
        %1160 = vst.msk [vmem:[%s1159] sm:$0xff] %vm774, %v1158
        %v1161 = vpack.c.bf16 %v1158, %v1158
        %1162 = vrot.lane.b32.xlu0 %v837, 80
        %v1163 = vpop.permute.xlu0 %1162
        %v1165 = vsel %vm774, %v1161, 0
        %v1168 = vsel %vm843, %v1163, 0
        %1170 = vmatprep.subr.bf16.mxu0 0
        %1171 = vmatpush1.bf16.msra.mxu0 %v1168
        %1172 = vmatprep.subr.bf16.mxu0 0
        %1173 = vmatpush1.bf16.msra.mxu0 0
        %1174 = vmatprep.subr.bf16.mxu0 0
        %1175 = vmatpush1.bf16.msra.mxu0 0
        %1176 = vmatprep.subr.bf16.mxu0 0
        %1177 = vmatpush1.bf16.msra.mxu0 0
        %1178 = vmatprep.subr.bf16.mxu0 0
        %1179 = vmatpush1.bf16.msra.mxu0 0
        %1180 = vmatprep.subr.bf16.mxu0 0
        %1181 = vmatpush1.bf16.msra.mxu0 0
        %1182 = vmatprep.subr.bf16.mxu0 0
        %1183 = vmatpush1.bf16.msra.mxu0 0
        %1184 = vmatprep.subr.bf16.mxu0 0
        %1185 = vmatpush1.bf16.msra.mxu0 0
        %1186 = vmatprep.subr.bf16.mxu0 0
        %1187 = vmatpush1.bf16.msra.mxu0 0
        %1188 = vmatprep.subr.bf16.mxu0 0
        %1189 = vmatpush1.bf16.msra.mxu0 0
        %1190 = vmatprep.subr.bf16.mxu0 0
        %1191 = vmatpush1.bf16.msra.mxu0 0
        %1192 = vmatprep.subr.bf16.mxu0 0
        %1193 = vmatpush1.bf16.msra.mxu0 0
        %1194 = vmatprep.subr.bf16.mxu0 0
        %1195 = vmatpush1.bf16.msra.mxu0 0
        %1196 = vmatprep.subr.bf16.mxu0 0
        %1197 = vmatpush1.bf16.msra.mxu0 0
        %1198 = vmatprep.subr.bf16.mxu0 0
        %1199 = vmatpush1.bf16.msra.mxu0 0
        %1200 = vmatprep.subr.bf16.mxu0 0
        %1201 = vmatpush1.bf16.msra.mxu0 0
        %1202 = vmatprep.mubr.bf16.mxu0 0
        %1203 = vmatmul.mubr.bf16.gmra.mrb[0].mxu0 %v1165
        %v1204 = vpop.f32.mrb[0].mxu0
        %v1205 = vadd.f32 0.0, %v1204
        %v1206 = vpop.f32.mrb[0].mxu0
        %v1207 = vpop.f32.mrb[0].mxu0
        %v1208 = vpop.f32.mrb[0].mxu0
        %1209 = vdwg.mxu0
        %v1210 = vpack.c.bf16 %v1205, %v1205
        %v1212 = vsel %vm774, %v1210, 0
        %v1215 = vsel %vm843, %v770, 0
        %1217 = vmatprep.subr.bf16.mxu0 0
        %1218 = vmatpush1.bf16.msra.mxu0 %v1215
        %1219 = vmatprep.subr.bf16.mxu0 0
        %1220 = vmatpush1.bf16.msra.mxu0 0
        %1221 = vmatprep.subr.bf16.mxu0 0
        %1222 = vmatpush1.bf16.msra.mxu0 0
        %1223 = vmatprep.subr.bf16.mxu0 0
        %1224 = vmatpush1.bf16.msra.mxu0 0
        %1225 = vmatprep.subr.bf16.mxu0 0
        %1226 = vmatpush1.bf16.msra.mxu0 0
        %1227 = vmatprep.subr.bf16.mxu0 0
        %1228 = vmatpush1.bf16.msra.mxu0 0
        %1229 = vmatprep.subr.bf16.mxu0 0
        %1230 = vmatpush1.bf16.msra.mxu0 0
        %1231 = vmatprep.subr.bf16.mxu0 0
        %1232 = vmatpush1.bf16.msra.mxu0 0
        %1233 = vmatprep.subr.bf16.mxu0 0
        %1234 = vmatpush1.bf16.msra.mxu0 0
        %1235 = vmatprep.subr.bf16.mxu0 0
        %1236 = vmatpush1.bf16.msra.mxu0 0
        %1237 = vmatprep.subr.bf16.mxu0 0
        %1238 = vmatpush1.bf16.msra.mxu0 0
        %1239 = vmatprep.subr.bf16.mxu0 0
        %1240 = vmatpush1.bf16.msra.mxu0 0
        %1241 = vmatprep.subr.bf16.mxu0 0
        %1242 = vmatpush1.bf16.msra.mxu0 0
        %1243 = vmatprep.subr.bf16.mxu0 0
        %1244 = vmatpush1.bf16.msra.mxu0 0
        %1245 = vmatprep.subr.bf16.mxu0 0
        %1246 = vmatpush1.bf16.msra.mxu0 0
        %1247 = vmatprep.subr.bf16.mxu0 0
        %1248 = vmatpush1.bf16.msra.mxu0 0
        %1249 = vmatprep.mubr.bf16.mxu0 0
        %1250 = vmatmul.mubr.bf16.gmra.mrb[0].mxu0 %v1212
        %v1251 = vpop.f32.mrb[0].mxu0
        %v1252 = vadd.f32 0.0, %v1251
        %v1253 = vpop.f32.mrb[0].mxu0
        %v1254 = vpop.f32.mrb[0].mxu0
        %v1255 = vpop.f32.mrb[0].mxu0
        %1256 = vdwg.mxu0
        %v1257 = vadd.f32 %v1096, %v1252
        %1258 = vrot.lane.b32.xlu0 %v766, 104
        %v1259 = vpop.permute.xlu0 %1258
        %1260 = vrot.lane.b32.xlu0 %v837, 104
        %v1261 = vpop.permute.xlu0 %1260
        %v1263 = vsel %vm774, %v1259, 0
        %v1266 = vsel %vm774, %v1261, 0
        %1268 = vmatprep.subr.bf16.mxu0 0
        %1269 = vmatpush1.bf16.xpose.msra.mxu0 %v1266
        %1270 = vmatprep.subr.bf16.mxu0 0
        %1271 = vmatpush1.bf16.xpose.msra.mxu0 0
        %1272 = vmatprep.subr.bf16.mxu0 0
        %1273 = vmatpush1.bf16.xpose.msra.mxu0 0
        %1274 = vmatprep.subr.bf16.mxu0 0
        %1275 = vmatpush1.bf16.xpose.msra.mxu0 0
        %1276 = vmatprep.subr.bf16.mxu0 0
        %1277 = vmatpush1.bf16.xpose.msra.mxu0 0
        %1278 = vmatprep.subr.bf16.mxu0 0
        %1279 = vmatpush1.bf16.xpose.msra.mxu0 0
        %1280 = vmatprep.subr.bf16.mxu0 0
        %1281 = vmatpush1.bf16.xpose.msra.mxu0 0
        %1282 = vmatprep.subr.bf16.mxu0 0
        %1283 = vmatpush1.bf16.xpose.msra.mxu0 0
        %1284 = vmatprep.subr.bf16.mxu0 0
        %1285 = vmatpush1.bf16.xpose.msra.mxu0 0
        %1286 = vmatprep.subr.bf16.mxu0 0
        %1287 = vmatpush1.bf16.xpose.msra.mxu0 0
        %1288 = vmatprep.subr.bf16.mxu0 0
        %1289 = vmatpush1.bf16.xpose.msra.mxu0 0
        %1290 = vmatprep.subr.bf16.mxu0 0
        %1291 = vmatpush1.bf16.xpose.msra.mxu0 0
        %1292 = vmatprep.subr.bf16.mxu0 0
        %1293 = vmatpush1.bf16.xpose.msra.mxu0 0
        %1294 = vmatprep.subr.bf16.mxu0 0
        %1295 = vmatpush1.bf16.xpose.msra.mxu0 0
        %1296 = vmatprep.subr.bf16.mxu0 0
        %1297 = vmatpush1.bf16.xpose.msra.mxu0 0
        %1298 = vmatprep.subr.bf16.mxu0 0
        %1299 = vmatpush1.bf16.xpose.msra.mxu0 0
        %1300 = vmatprep.mubr.bf16.mxu0 0
        %1301 = vmatmul.mubr.bf16.gmra.mrb[0].mxu0 %v1263
        %v1302 = vpop.f32.mrb[0].mxu0
        %v1303 = vadd.f32 0.0, %v1302
        %v1304 = vpop.f32.mrb[0].mxu0
        %v1305 = vpop.f32.mrb[0].mxu0
        %v1306 = vpop.f32.mrb[0].mxu0
        %1307 = vdwg.mxu0
        %v1308 = vsel %vm773, %v1303, -1e+09
        %v1309 = vsel %vm774, %v1308, -inf
        %1310 = vmax.xlane.f32.xlu0 %v1309
        %v1311 = vpop.xlane.xlu0 %1310
        %v1312 = vsub.f32 %v1308, %v1311
        %v1313 = vmul.f32 %v1312, 1.442695
        %v1314 = vpow.pop %v1313
        %v1315 = vsel %vm774, %v1314, 0.0
        %1316 = vadd.xlane.f32.xlu0 %v1315
        %v1317 = vpop.xlane.xlu0 %1316
        %v1318 = vrcp.pop %v1317
        %v1319 = vmul.f32 %v1314, %v1318
        %s1320 = scalar_lea.vmem %s626, 24 [#allocation12]
        %1321 = vst.msk [vmem:[%s1320] sm:$0xff] %vm774, %v1319
        %v1322 = vpack.c.bf16 %v1319, %v1319
        %1323 = vrot.lane.b32.xlu0 %v837, 72
        %v1324 = vpop.permute.xlu0 %1323
        %v1326 = vsel %vm774, %v1322, 0
        %v1329 = vsel %vm843, %v1324, 0
        %1331 = vmatprep.subr.bf16.mxu0 0
        %1332 = vmatpush1.bf16.msra.mxu0 %v1329
        %1333 = vmatprep.subr.bf16.mxu0 0
        %1334 = vmatpush1.bf16.msra.mxu0 0
        %1335 = vmatprep.subr.bf16.mxu0 0
        %1336 = vmatpush1.bf16.msra.mxu0 0
        %1337 = vmatprep.subr.bf16.mxu0 0
        %1338 = vmatpush1.bf16.msra.mxu0 0
        %1339 = vmatprep.subr.bf16.mxu0 0
        %1340 = vmatpush1.bf16.msra.mxu0 0
        %1341 = vmatprep.subr.bf16.mxu0 0
        %1342 = vmatpush1.bf16.msra.mxu0 0
        %1343 = vmatprep.subr.bf16.mxu0 0
        %1344 = vmatpush1.bf16.msra.mxu0 0
        %1345 = vmatprep.subr.bf16.mxu0 0
        %1346 = vmatpush1.bf16.msra.mxu0 0
        %1347 = vmatprep.subr.bf16.mxu0 0
        %1348 = vmatpush1.bf16.msra.mxu0 0
        %1349 = vmatprep.subr.bf16.mxu0 0
        %1350 = vmatpush1.bf16.msra.mxu0 0
        %1351 = vmatprep.subr.bf16.mxu0 0
        %1352 = vmatpush1.bf16.msra.mxu0 0
        %1353 = vmatprep.subr.bf16.mxu0 0
        %1354 = vmatpush1.bf16.msra.mxu0 0
        %1355 = vmatprep.subr.bf16.mxu0 0
        %1356 = vmatpush1.bf16.msra.mxu0 0
        %1357 = vmatprep.subr.bf16.mxu0 0
        %1358 = vmatpush1.bf16.msra.mxu0 0
        %1359 = vmatprep.subr.bf16.mxu0 0
        %1360 = vmatpush1.bf16.msra.mxu0 0
        %1361 = vmatprep.subr.bf16.mxu0 0
        %1362 = vmatpush1.bf16.msra.mxu0 0
        %1363 = vmatprep.mubr.bf16.mxu0 0
        %1364 = vmatmul.mubr.bf16.gmra.mrb[0].mxu0 %v1326
        %v1365 = vpop.f32.mrb[0].mxu0
        %v1366 = vadd.f32 0.0, %v1365
        %v1367 = vpop.f32.mrb[0].mxu0
        %v1368 = vpop.f32.mrb[0].mxu0
        %v1369 = vpop.f32.mrb[0].mxu0
        %1370 = vdwg.mxu0
        %v1371 = vpack.c.bf16 %v1366, %v1366
        %v1373 = vsel %vm774, %v1371, 0
        %v1376 = vsel %vm843, %v771, 0
        %1378 = vmatprep.subr.bf16.mxu0 0
        %1379 = vmatpush1.bf16.msra.mxu0 %v1376
        %1380 = vmatprep.subr.bf16.mxu0 0
        %1381 = vmatpush1.bf16.msra.mxu0 0
        %1382 = vmatprep.subr.bf16.mxu0 0
        %1383 = vmatpush1.bf16.msra.mxu0 0
        %1384 = vmatprep.subr.bf16.mxu0 0
        %1385 = vmatpush1.bf16.msra.mxu0 0
        %1386 = vmatprep.subr.bf16.mxu0 0
        %1387 = vmatpush1.bf16.msra.mxu0 0
        %1388 = vmatprep.subr.bf16.mxu0 0
        %1389 = vmatpush1.bf16.msra.mxu0 0
        %1390 = vmatprep.subr.bf16.mxu0 0
        %1391 = vmatpush1.bf16.msra.mxu0 0
        %1392 = vmatprep.subr.bf16.mxu0 0
        %1393 = vmatpush1.bf16.msra.mxu0 0
        %1394 = vmatprep.subr.bf16.mxu0 0
        %1395 = vmatpush1.bf16.msra.mxu0 0
        %1396 = vmatprep.subr.bf16.mxu0 0
        %1397 = vmatpush1.bf16.msra.mxu0 0
        %1398 = vmatprep.subr.bf16.mxu0 0
        %1399 = vmatpush1.bf16.msra.mxu0 0
        %1400 = vmatprep.subr.bf16.mxu0 0
        %1401 = vmatpush1.bf16.msra.mxu0 0
        %1402 = vmatprep.subr.bf16.mxu0 0
        %1403 = vmatpush1.bf16.msra.mxu0 0
        %1404 = vmatprep.subr.bf16.mxu0 0
        %1405 = vmatpush1.bf16.msra.mxu0 0
        %1406 = vmatprep.subr.bf16.mxu0 0
        %1407 = vmatpush1.bf16.msra.mxu0 0
        %1408 = vmatprep.subr.bf16.mxu0 0
        %1409 = vmatpush1.bf16.msra.mxu0 0
        %1410 = vmatprep.mubr.bf16.mxu0 0
        %1411 = vmatmul.mubr.bf16.gmra.mrb[0].mxu0 %v1373
        %v1412 = vpop.f32.mrb[0].mxu0
        %v1413 = vadd.f32 0.0, %v1412
        %v1414 = vpop.f32.mrb[0].mxu0
        %v1415 = vpop.f32.mrb[0].mxu0
        %v1416 = vpop.f32.mrb[0].mxu0
        %1417 = vdwg.mxu0
        %v1418 = vadd.f32 %v1257, %v1413
        %v1419 = vld [vmem:[%s6] sm:$0x1]
        %v1420 = vld [vmem:[%s7] sm:$0x1]
        %v1421 = vsel %vm721, %v1418, 0.0
        %1422 = vadd.xlane.f32.xlu0 %v1421
        %v1423 = vpop.xlane.xlu0 %1422
        %v1424 = vrcp.pop 32.0
        %v1425 = vmul.f32 %v1423, %v1424
        %v1426 = vsub.f32 %v1418, %v1425
        %v1427 = vmul.f32 %v1426, %v1426
        %v1428 = vsel %vm721, %v1427, 0.0
        %1429 = vadd.xlane.f32.xlu0 %v1428
        %v1430 = vpop.xlane.xlu0 %1429
        %v1431 = vmul.f32 %v1430, %v1424
        %v1432 = vadd.f32 %v1431, 1e-06
        %v1433 = vrsqrt.pop %v1432
        %v1434 = vmul.f32 %v1426, %v1433
        %v1436 = vlaneseq
        %v1437 = vshrl.u32 %v1436, 7
        %v1438 = vsub.s32 0, %v1437
        %v1439 = vrot.slane %v1419, %v1438
        %v1441 = vmul.f32 %v1434, %v1439
        %v1443 = vlaneseq
        %v1444 = vshrl.u32 %v1443, 7
        %v1445 = vsub.s32 0, %v1444
        %v1446 = vrot.slane %v1420, %v1445
        %v1448 = vadd.f32 %v1441, %v1446
        %v1449 = vpack.c.bf16 %v1448, %v1448
        %v1450 = vld [vmem:[%s11] sm:$0x1]
        %v1452 = vlaneseq
        %v1453 = vshrl.u32 %v1452, 7
        %v1454 = vsub.s32 0, %v1453
        %v1455 = vrot.slane %v1450, %v1454
        %v1457 = vadd.f32 %v1448, %v1455
        %v1458 = vld [vmem:[#allocation9] sm:$0xf]
        %v1459 = vld [vmem:[#allocation9 + $0x4] sm:$0xf]
        %v1460 = vld [vmem:[#allocation9 + $0x8] sm:$0xf]
        %v1461 = vld [vmem:[#allocation9 + $0xc] sm:$0xf]
        %v1462 = vld [vmem:[%s9] sm:$0x1]
        %v1464 = vlaneseq
        %v1465 = vshrl.u32 %v1464, 7
        %v1466 = vsub.s32 0, %v1465
        %v1467 = vrot.slane %v1462, %v1466
        %v1473 = vunpack.c.l.b16 %v1458
        %v1474 = vunpack.c.l.b16 %v1459
        %v1475 = vunpack.c.l.b16 %v1460
        %v1476 = vunpack.c.l.b16 %v1461
        %v1477 = vpack.c.b16 %v1474, %v1473
        %v1478 = vpack.c.b16 %v1476, %v1475
        %v1482 = vsel %vm721, %v1449, 0
        %1484 = vmatprep.subr.bf16.mxu0 0
        %1485 = vmatpush1.bf16.msra.mxu0 %v1477
        %1486 = vmatprep.subr.bf16.mxu0 0
        %1487 = vmatpush1.bf16.msra.mxu0 %v1478
        %1488 = vmatprep.subr.bf16.mxu0 0
        %1489 = vmatpush1.bf16.msra.mxu0 0
        %1490 = vmatprep.subr.bf16.mxu0 0
        %1491 = vmatpush1.bf16.msra.mxu0 0
        %1492 = vmatprep.subr.bf16.mxu0 0
        %1493 = vmatpush1.bf16.msra.mxu0 0
        %1494 = vmatprep.subr.bf16.mxu0 0
        %1495 = vmatpush1.bf16.msra.mxu0 0
        %1496 = vmatprep.subr.bf16.mxu0 0
        %1497 = vmatpush1.bf16.msra.mxu0 0
        %1498 = vmatprep.subr.bf16.mxu0 0
        %1499 = vmatpush1.bf16.msra.mxu0 0
        %1500 = vmatprep.subr.bf16.mxu0 0
        %1501 = vmatpush1.bf16.msra.mxu0 0
        %1502 = vmatprep.subr.bf16.mxu0 0
        %1503 = vmatpush1.bf16.msra.mxu0 0
        %1504 = vmatprep.subr.bf16.mxu0 0
        %1505 = vmatpush1.bf16.msra.mxu0 0
        %1506 = vmatprep.subr.bf16.mxu0 0
        %1507 = vmatpush1.bf16.msra.mxu0 0
        %1508 = vmatprep.subr.bf16.mxu0 0
        %1509 = vmatpush1.bf16.msra.mxu0 0
        %1510 = vmatprep.subr.bf16.mxu0 0
        %1511 = vmatpush1.bf16.msra.mxu0 0
        %1512 = vmatprep.subr.bf16.mxu0 0
        %1513 = vmatpush1.bf16.msra.mxu0 0
        %1514 = vmatprep.subr.bf16.mxu0 0
        %1515 = vmatpush1.bf16.msra.mxu0 0
        %1516 = vmatprep.mubr.bf16.mxu0 0
        %1517 = vmatmul.mubr.bf16.gmra.mrb[0].mxu0 %v1482
        %v1518 = vpop.f32.mrb[0].mxu0
        %v1519 = vadd.f32 %v1467, %v1518
        %v1520 = vpop.f32.mrb[0].mxu0
        %v1521 = vpop.f32.mrb[0].mxu0
        %v1522 = vpop.f32.mrb[0].mxu0
        %1523 = vdwg.mxu0
        %v1524 = vmax.f32 %v1519, 0.0
        %v1525 = vpack.c.bf16 %v1524, %v1524
        %v1526 = vld [vmem:[%s10] sm:$0xf]
        %v1527 = vld [vmem:[%s10 + $0x4] sm:$0xf]
        %v1528 = vld [vmem:[%s10 + $0x8] sm:$0xf]
        %v1529 = vld [vmem:[%s10 + $0xc] sm:$0xf]
        %v1530 = vld [vmem:[%s10 + $0x10] sm:$0xf]
        %v1531 = vld [vmem:[%s10 + $0x14] sm:$0xf]
        %v1532 = vld [vmem:[%s10 + $0x18] sm:$0xf]
        %v1533 = vld [vmem:[%s10 + $0x1c] sm:$0xf]
        %v1542 = vunpack.c.l.b16 %v1526
        %v1543 = vunpack.c.l.b16 %v1527
        %v1544 = vunpack.c.l.b16 %v1528
        %v1545 = vunpack.c.l.b16 %v1529
        %v1546 = vunpack.c.l.b16 %v1530
        %v1547 = vunpack.c.l.b16 %v1531
        %v1548 = vunpack.c.l.b16 %v1532
        %v1549 = vunpack.c.l.b16 %v1533
        %v1550 = vpack.c.b16 %v1543, %v1542
        %v1551 = vpack.c.b16 %v1545, %v1544
        %v1552 = vpack.c.b16 %v1547, %v1546
        %v1553 = vpack.c.b16 %v1549, %v1548
        %vm1558 = vcmask 523264
        %v1560 = vsel %vm1558, %v1525, 0
        %1562 = vmatprep.subr.bf16.mxu0 0
        %1563 = vmatpush1.bf16.msra.mxu0 %v1550
        %1564 = vmatprep.subr.bf16.mxu0 0
        %1565 = vmatpush1.bf16.msra.mxu0 %v1551
        %1566 = vmatprep.subr.bf16.mxu0 0
        %1567 = vmatpush1.bf16.msra.mxu0 %v1552
        %1568 = vmatprep.subr.bf16.mxu0 0
        %1569 = vmatpush1.bf16.msra.mxu0 %v1553
        %1570 = vmatprep.subr.bf16.mxu0 0
        %1571 = vmatpush1.bf16.msra.mxu0 0
        %1572 = vmatprep.subr.bf16.mxu0 0
        %1573 = vmatpush1.bf16.msra.mxu0 0
        %1574 = vmatprep.subr.bf16.mxu0 0
        %1575 = vmatpush1.bf16.msra.mxu0 0
        %1576 = vmatprep.subr.bf16.mxu0 0
        %1577 = vmatpush1.bf16.msra.mxu0 0
        %1578 = vmatprep.subr.bf16.mxu0 0
        %1579 = vmatpush1.bf16.msra.mxu0 0
        %1580 = vmatprep.subr.bf16.mxu0 0
        %1581 = vmatpush1.bf16.msra.mxu0 0
        %1582 = vmatprep.subr.bf16.mxu0 0
        %1583 = vmatpush1.bf16.msra.mxu0 0
        %1584 = vmatprep.subr.bf16.mxu0 0
        %1585 = vmatpush1.bf16.msra.mxu0 0
        %1586 = vmatprep.subr.bf16.mxu0 0
        %1587 = vmatpush1.bf16.msra.mxu0 0
        %1588 = vmatprep.subr.bf16.mxu0 0
        %1589 = vmatpush1.bf16.msra.mxu0 0
        %1590 = vmatprep.subr.bf16.mxu0 0
        %1591 = vmatpush1.bf16.msra.mxu0 0
        %1592 = vmatprep.subr.bf16.mxu0 0
        %1593 = vmatpush1.bf16.msra.mxu0 0
        %1594 = vmatprep.mubr.bf16.mxu0 0
        %1595 = vmatmul.mubr.bf16.gmra.mrb[0].mxu0 %v1560
        %v1596 = vpop.f32.mrb[0].mxu0
        %v1597 = vadd.f32 0.0, %v1596
        %v1598 = vpop.f32.mrb[0].mxu0
        %v1599 = vpop.f32.mrb[0].mxu0
        %v1600 = vpop.f32.mrb[0].mxu0
        %1601 = vdwg.mxu0
        %v1602 = vadd.f32 %v1457, %v1597
        %v1603 = vld [vmem:[%s12] sm:$0x1]
        %v1604 = vld [vmem:[%s13] sm:$0x1]
        %v1605 = vsel %vm721, %v1602, 0.0
        %1606 = vadd.xlane.f32.xlu0 %v1605
        %v1607 = vpop.xlane.xlu0 %1606
        %v1608 = vmul.f32 %v1607, %v1424
        %v1609 = vsub.f32 %v1602, %v1608
        %v1610 = vmul.f32 %v1609, %v1609
        %v1611 = vsel %vm721, %v1610, 0.0
        %1612 = vadd.xlane.f32.xlu0 %v1611
        %v1613 = vpop.xlane.xlu0 %1612
        %v1614 = vmul.f32 %v1613, %v1424
        %v1615 = vadd.f32 %v1614, 1e-06
        %v1616 = vrsqrt.pop %v1615
        %v1617 = vmul.f32 %v1609, %v1616
        %v1619 = vlaneseq
        %v1620 = vshrl.u32 %v1619, 7
        %v1621 = vsub.s32 0, %v1620
        %v1622 = vrot.slane %v1603, %v1621
        %v1624 = vmul.f32 %v1617, %v1622
        %v1626 = vlaneseq
        %v1627 = vshrl.u32 %v1626, 7
        %v1628 = vsub.s32 0, %v1627
        %v1629 = vrot.slane %v1604, %v1628
        %v1631 = vadd.f32 %v1624, %v1629
        %1632 = vst.msk [vmem:[%s619] sm:$0xff] %vm721, %v1631
        %s1633 = sand.u32 %s375, 1
        %s1634 = scalar_lea.sflag [#allocation5], %s1633
        %s1635 = sand.u32 %s375, 1
        %s1636 = smul.addr %s1635, 8
        %s1637 = scalar_lea.vmem [#allocation11], %s1636
        %s1638 = sand.u32 %s403, 1
        %s1639 = scalar_lea.sflag [#allocation13], %s1638
        %s1640 = sand.u32 %s403, 1
        %s1641 = smul.addr %s1640, 32
        %s1642 = scalar_lea.vmem [#allocation12], %s1641
        // Predicated region
        $region97: #{tpu_custom_call.1} parent=75 // pred_check
          %p1643 = pneg %p385
        $region98: #{tpu_custom_call.1} parent=75 // pred_check_branch
          %1645 = sbr.rel (%p1643) target = $region100
        $region99: #{tpu_custom_call.1} parent=75 // pred_region
          %s1647 = ssub.s32 128, 128
          %1648 = vsyncadd %s1634, %s1647
          %s1649 = sadd.s32 %s45, %s44
          %s1650 = smul.addr %s1649, 128
          %s1651 = scalar_lea.hbm %s14, %s1650
          %s1653 = sshll.u32 %s1637, 4
          %s1654 = int_to_ptr.vmem [resolvable:$true] %s1653
          %1656 = dma.vmem_to_hbm [thread:$0]  %s1654, 128, %s1651, %s1634
        $region100: #{tpu_custom_call.1} parent=75 // pred_fallthru
          _
        // Predicated region
        $region101: #{tpu_custom_call.1} parent=75 // pred_check
          %p1657 = pneg %p413
        $region102: #{tpu_custom_call.1} parent=75 // pred_check_branch
          %1659 = sbr.rel (%p1657) target = $region104
        $region103: #{tpu_custom_call.1} parent=75 // pred_region
          %s1661 = ssub.s32 512, 512
          %1662 = vsyncadd %s1639, %s1661
          %s1663 = smul.addr %s44, 4
          %s1664 = sadd.s32 %s45, %s1663
          %s1665 = smul.addr %s1664, 128
          %s1666 = scalar_lea.hbm %s15, %s1665
          %s1667 = sshll.u32 %s1642, 4
          %s1668 = int_to_ptr.vmem [resolvable:$true] %s1667
          %1673 = dma.vmem_to_hbm [thread:$0]  %s1668, 512, %s1666, %s1639, 128, 128, 8
        $region104: #{tpu_custom_call.1} parent=75 // pred_fallthru
          _
      $region76: #{tpu_custom_call.1} parent=5 // pred_fallthru
        _
      %p1674 = scmp.le.s32.totalorder 2, %s35
      // Predicated region
      $region105: #{tpu_custom_call.1} parent=5 // pred_check
        %p1675 = pneg %p1674
      $region106: #{tpu_custom_call.1} parent=5 // pred_check_branch
        %1677 = sbr.rel (%p1675) target = $region108
      $region107: #{tpu_custom_call.1} parent=5 // pred_region
        %s1678 = ssub.s32 %s35, 2
        // Predicated region
        $region109: #{tpu_custom_call.1} parent=107 // pred_check
          %p1679 = pneg %p391
        $region110: #{tpu_custom_call.1} parent=107 // pred_check_branch
          %1681 = sbr.rel (%p1679) target = $region112
        $region111: #{tpu_custom_call.1} parent=107 // pred_region
          %s1682 = sand.u32 %s376, 1
          %s1683 = scalar_lea.sflag [#allocation5], %s1682
          %s1684 = sand.u32 %s376, 1
          %s1685 = smul.addr %s1684, 8
          %s1686 = scalar_lea.vmem [#allocation11], %s1685
          %1687 = dma.done %s1683, 128
        $region112: #{tpu_custom_call.1} parent=107 // pred_fallthru
          _
        // Predicated region
        $region113: #{tpu_custom_call.1} parent=107 // pred_check
          %p1688 = pneg %p419
        $region114: #{tpu_custom_call.1} parent=107 // pred_check_branch
          %1690 = sbr.rel (%p1688) target = $region116
        $region115: #{tpu_custom_call.1} parent=107 // pred_region
          %s1691 = sand.u32 %s404, 1
          %s1692 = scalar_lea.sflag [#allocation13], %s1691
          %s1693 = sand.u32 %s404, 1
          %s1694 = smul.addr %s1693, 32
          %s1695 = scalar_lea.vmem [#allocation12], %s1694
          %1696 = dma.done %s1692, 512
        $region116: #{tpu_custom_call.1} parent=107 // pred_fallthru
          _
      $region108: #{tpu_custom_call.1} parent=5 // pred_fallthru
        _
    $region6: #{tpu_custom_call.1} parent=1 // loop_footer
      %s39 = sadd.s32 1, %s35
    $region7: #{tpu_custom_call.1} parent=1 // loop_footer_branch
      %34 = sbr.rel target = $region3
    $region8: #{tpu_custom_call.1} parent=1 // loop_exit
      _
    %1697 = vsyncpa [#allocation4], 1
    %s1698 = scalar_lea.sflag [#allocation4], 1
    %1699 = vsyncpa %s1698, 1
    %1700 = vsyncpa [#allocation7], 1
    %s1701 = scalar_lea.sflag [#allocation7], 1
    %1702 = vsyncpa %s1701, 1
    %1703 = vsyncpa [#allocation10], 1
    %1704 = vsyncpa [#allocation5], 1
    %s1705 = scalar_lea.sflag [#allocation5], 1
    %1706 = vsyncpa %s1705, 1
    %1707 = vsyncpa [#allocation13], 1
    %s1708 = scalar_lea.sflag [#allocation13], 1
    %1709 = vsyncpa %s1708, 1

</llo_original>
